<compile_context>
chip_gen: v7x
topology: tpu7x:2x2x1
jax: 0.10.0
libtpu: 0.0.40
codegen_flags: <defaults>
</compile_context>

<pallas_src>
import functools

import jax
import jax.numpy as jnp
from jax.experimental import pallas as pl
from jax.experimental.pallas import tpu as pltpu


def _sa_pass1_kernel(xq_ref, xk_ref, g_ref, wv_ref, bv_ref, wt_ref, bt_ref,
                     t_ref, sums_ref, acc_ref, *, c):
    """Attention + trans_conv for one (batch, query-tile) grid step."""
    qi = pl.program_id(1)

    @pl.when(qi == 0)
    def _init():
        acc_ref[...] = jnp.zeros_like(acc_ref)

    xq = xq_ref[...]                      # (C, tq)  query columns of x
    xk = xk_ref[...]                      # (C, N)   all key columns of x
    dt = xq.dtype

    # energy[i, j] = x[:, i]^T (Wq^T Wq) x[:, j]   (q_conv / k_conv are tied)
    zt = jax.lax.dot_general(xq, g_ref[...], (((0,), (0,)), ((), ())),
                             preferred_element_type=jnp.float32)       # (tq, C)
    energy = jax.lax.dot_general(zt.astype(dt), xk, (((1,), (0,)), ((), ())),
                                 preferred_element_type=jnp.float32)   # (tq, N)

    # row softmax over keys (lane dim); divide only the small (tq, 1) vector
    m = jnp.max(energy, axis=-1, keepdims=True)
    e = jnp.exp(energy - m)
    attn = e * (1.0 / jnp.sum(e, axis=-1, keepdims=True))              # (tq, N)

    # v for this query tile; the augmented row `c` is all ones, so its slice
    # of the accumulator becomes the per-key column sum of `attn`.
    v = jax.lax.dot_general(wv_ref[...], xq, (((1,), (0,)), ((), ())),
                            preferred_element_type=jnp.float32) + bv_ref[...]
    acc_ref[...] += jax.lax.dot_general(v.astype(dt), attn.astype(dt),
                                        (((1,), (0,)), ((), ())),
                                        preferred_element_type=jnp.float32)

    @pl.when(qi == pl.num_programs(1) - 1)
    def _finalize():
        acc = acc_ref[...]                                   # (C+1, N) f32
        inv_col = 1.0 / (1e-9 + acc[c:c + 1, :])             # (1, N)
        x_r = acc[:c, :] * inv_col                           # (C, N)
        diff = (xk.astype(jnp.float32) - x_r).astype(dt)
        t = jax.lax.dot_general(wt_ref[...], diff, (((1,), (0,)), ((), ())),
                                preferred_element_type=jnp.float32) + bt_ref[...]
        t_ref[...] = t.astype(t_ref.dtype)
        # per-batch BatchNorm partials (reduced across B in the wrapper)
        sums_ref[:, 0:1] = jnp.sum(t, axis=1, keepdims=True)
        sums_ref[:, 1:2] = jnp.sum(t * t, axis=1, keepdims=True)


def _sa_pass2_kernel(x_ref, t_ref, scale_ref, shift_ref, out_ref):
    """Fused BatchNorm affine + ReLU + residual add (elementwise)."""
    t = t_ref[...].astype(jnp.float32)
    tn = t * scale_ref[...] + shift_ref[...]
    out_ref[...] = (x_ref[...].astype(jnp.float32)
                    + jnp.maximum(tn, 0.0)).astype(out_ref.dtype)


def _pick_tile(n):
    for t in (256, 128):
        if n % t == 0:
            return t
    return n


def _clamp_vmem(nbytes):
    return int(min(max(nbytes, 32 * 1024 * 1024), 64 * 1024 * 1024))


@jax.jit
def sa_layer(x, params):
    """x: (B, C, N) as in the PyTorch Conv1d layout.  Returns (B, C, N)."""
    wq, wv, bv, wt, bt, gamma, beta = params
    B, C, N = x.shape
    dt = x.dtype
    es = jnp.dtype(dt).itemsize

    tq = _pick_tile(N)                 # query tile (rows of the energy tile)
    tn2 = _pick_tile(N)                # point tile for the elementwise pass

    # tied q/k convs -> Gram matrix: energy = x^T (Wq^T Wq) x
    g = (wq.T @ wq).astype(dt)                                      # (C, C)
    # v_conv augmented with an all-ones output channel (row C) -> column sums
    wv_aug = jnp.concatenate([wv, jnp.zeros((1, C), wv.dtype)], 0).astype(dt)
    bv_aug = jnp.concatenate([bv, jnp.ones((1,), bv.dtype)]
                             ).reshape(C + 1, 1).astype(jnp.float32)
    wt_c = wt.astype(dt)
    bt_c = bt.reshape(C, 1).astype(jnp.float32)

    flops1 = 2 * B * (N * N * (2 * C + 1) + C * N * (3 * C + 1))
    bytes1 = 3 * B * C * N * es + B * C * 2 * 4 + (3 * C * C + 4 * C) * es
    vmem1 = _clamp_vmem(2 * C * tq * es + 4 * C * N * es + (C + 1) * N * 4
                        + 8 * tq * N * 4 + 4 * C * C * es + (2 << 20))

    t_pre, sums = pl.pallas_call(
        functools.partial(_sa_pass1_kernel, c=C),
        grid=(B, N // tq),
        in_specs=[
            pl.BlockSpec((None, C, tq), lambda b, q: (b, 0, q)),   # x: query cols
            pl.BlockSpec((None, C, N), lambda b, q: (b, 0, 0)),    # x: all keys
            pl.BlockSpec((C, C), lambda b, q: (0, 0)),             # G = Wq^T Wq
            pl.BlockSpec((C + 1, C), lambda b, q: (0, 0)),         # Wv (augmented)
            pl.BlockSpec((C + 1, 1), lambda b, q: (0, 0)),         # bv (augmented)
            pl.BlockSpec((C, C), lambda b, q: (0, 0)),             # Wt
            pl.BlockSpec((C, 1), lambda b, q: (0, 0)),             # bt
        ],
        out_specs=(
            pl.BlockSpec((None, C, N), lambda b, q: (b, 0, 0)),    # pre-BN t
            pl.BlockSpec((None, C, 2), lambda b, q: (b, 0, 0)),    # BN partials
        ),
        out_shape=(
            jax.ShapeDtypeStruct((B, C, N), dt),
            jax.ShapeDtypeStruct((B, C, 2), jnp.float32),
        ),
        scratch_shapes=[pltpu.VMEM((C + 1, N), jnp.float32)],
        compiler_params=pltpu.CompilerParams(
            dimension_semantics=("parallel", "arbitrary"),
            vmem_limit_bytes=vmem1),
        cost_estimate=pl.CostEstimate(
            flops=flops1, transcendentals=B * N * N, bytes_accessed=bytes1),
    )(x, x, g, wv_aug, bv_aug, wt_c, bt_c)

    # BatchNorm1d training-mode statistics: global over (B, N), biased var.
    s = jnp.sum(sums, axis=0)                       # (C, 2)
    cnt = float(B * N)
    mean = s[:, 0] / cnt
    var = jnp.maximum(s[:, 1] / cnt - mean * mean, 0.0)
    invstd = jax.lax.rsqrt(var + 1e-5)
    scale = (gamma * invstd).astype(jnp.float32).reshape(C, 1)
    shift = (beta - mean * gamma * invstd).astype(jnp.float32).reshape(C, 1)

    vmem2 = _clamp_vmem(6 * C * tn2 * es + 8 * C * 4 + (1 << 20))
    out = pl.pallas_call(
        _sa_pass2_kernel,
        grid=(B, N // tn2),
        in_specs=[
            pl.BlockSpec((None, C, tn2), lambda b, j: (b, 0, j)),  # x (residual)
            pl.BlockSpec((None, C, tn2), lambda b, j: (b, 0, j)),  # pre-BN t
            pl.BlockSpec((C, 1), lambda b, j: (0, 0)),             # BN scale
            pl.BlockSpec((C, 1), lambda b, j: (0, 0)),             # BN shift
        ],
        out_specs=pl.BlockSpec((None, C, tn2), lambda b, j: (b, 0, j)),
        out_shape=jax.ShapeDtypeStruct((B, C, N), dt),
        input_output_aliases={1: 0},   # reuse t_pre's HBM buffer for the output
        compiler_params=pltpu.CompilerParams(
            dimension_semantics=("parallel", "parallel"),
            vmem_limit_bytes=vmem2),
        cost_estimate=pl.CostEstimate(
            flops=3 * B * C * N, transcendentals=0,
            bytes_accessed=3 * B * C * N * es),
    )(x, t_pre, scale, shift)
    return out


def sa_layer_reference(x_ncw, params):
    """Pure-JAX reference mirroring the PyTorch forward (training-mode BN)."""
    wq, wv, bv, wt, bt, gamma, beta = params
    x = x_ncw.astype(jnp.float32)                          # (B, C, N)
    q = jnp.einsum('dc,bcn->bdn', wq, x)                   # (B, C4, N)
    x_q = jnp.transpose(q, (0, 2, 1))                      # (B, N, C4)
    energy = jnp.einsum('bnd,bdm->bnm', x_q, q)            # (B, N, N)
    attn = jax.nn.softmax(energy, axis=-1)
    attn = attn / (1e-9 + jnp.sum(attn, axis=1, keepdims=True))
    x_v = jnp.einsum('dc,bcn->bdn', wv, x) + bv[None, :, None]
    x_r = jnp.einsum('bcm,bmn->bcn', x_v, attn)
    t = jnp.einsum('dc,bcn->bdn', wt, x - x_r) + bt[None, :, None]
    mean = jnp.mean(t, axis=(0, 2), keepdims=True)
    var = jnp.mean((t - mean) ** 2, axis=(0, 2), keepdims=True)
    tn = (t - mean) / jnp.sqrt(var + 1e-5)
    tn = tn * gamma[None, :, None] + beta[None, :, None]
    return x + jnp.maximum(tn, 0.0)


if __name__ == "__main__":
    B, C, N = 2, 32, 16            # channels=32 -> q/k dim = 8
    key = jax.random.PRNGKey(0)
    kx, kq, kv, kbv, kt, kbt = jax.random.split(key, 6)

    x = jax.random.normal(kx, (B, C, N), dtype=jnp.float32)

    # deterministic synthetic parameters (Conv1d 1x1 weights squeezed to 2-D)
    wq = jax.random.normal(kq, (C // 4, C), dtype=jnp.float32) * 0.1   # q==k (tied)
    wv = jax.random.normal(kv, (C, C), dtype=jnp.float32) * 0.1
    bv = jax.random.normal(kbv, (C,), dtype=jnp.float32) * 0.1
    wt = jax.random.normal(kt, (C, C), dtype=jnp.float32) * 0.1
    bt = jax.random.normal(kbt, (C,), dtype=jnp.float32) * 0.1
    gamma = jnp.ones((C,), dtype=jnp.float32)                           # BN defaults
    beta = jnp.zeros((C,), dtype=jnp.float32)
    params = (wq, wv, bv, wt, bt, gamma, beta)

    out = jax.block_until_ready(sa_layer(x, params))
    ref = jax.block_until_ready(sa_layer_reference(x, params))

    assert out.shape == (B, C, N)
    assert jnp.allclose(out, ref, atol=1e-4, rtol=1e-4), \
        float(jnp.max(jnp.abs(out - ref)))
    print("KERNEL_OK")
</pallas_src>

<mosaic_0001>
module attributes {stable_mosaic.version = 11 : i64} {
  func.func @_sa_pass1_kernel(%arg0: i32, %arg1: i32, %arg2: memref<1x32x16xf32, #tpu.memory_space<vmem>>, %arg3: memref<1x32x16xf32, #tpu.memory_space<vmem>>, %arg4: memref<32x32xf32, #tpu.memory_space<vmem>>, %arg5: memref<33x32xf32, #tpu.memory_space<vmem>>, %arg6: memref<33x1xf32, #tpu.memory_space<vmem>>, %arg7: memref<32x32xf32, #tpu.memory_space<vmem>>, %arg8: memref<32x1xf32, #tpu.memory_space<vmem>>, %arg9: memref<1x32x16xf32, #tpu.memory_space<vmem>>, %arg10: memref<1x32x2xf32, #tpu.memory_space<vmem>>, %arg11: memref<33x16xf32, #tpu.memory_space<vmem>>) attributes {dimension_semantics = [#tpu.dimension_semantics<parallel>, #tpu.dimension_semantics<arbitrary>], iteration_bounds = array<i64: 2, 1>, scalar_prefetch = 0 : i64, scratch_operands = 1 : i64, tpu.core_type = #tpu.core_type<tc>, window_params = [{transform_indices = @transform_0, window_bounds = array<i64: 1, 32, 16>}, {transform_indices = @transform_1, window_bounds = array<i64: 1, 32, 16>}, {pipeline_mode = #tpu.pipeline_mode<synchronous>, transform_indices = @transform_2, window_bounds = array<i64: 32, 32>}, {pipeline_mode = #tpu.pipeline_mode<synchronous>, transform_indices = @transform_3, window_bounds = array<i64: 33, 32>}, {pipeline_mode = #tpu.pipeline_mode<synchronous>, transform_indices = @transform_4, window_bounds = array<i64: 33, 1>}, {pipeline_mode = #tpu.pipeline_mode<synchronous>, transform_indices = @transform_5, window_bounds = array<i64: 32, 32>}, {pipeline_mode = #tpu.pipeline_mode<synchronous>, transform_indices = @transform_6, window_bounds = array<i64: 32, 1>}, {transform_indices = @transform_7, window_bounds = array<i64: 1, 32, 16>}, {transform_indices = @transform_8, window_bounds = array<i64: 1, 32, 2>}]} {
    %c0_i32 = arith.constant 0 : i32
    %0 = arith.cmpi eq, %arg1, %c0_i32 : i32
    %1 = arith.extui %0 : i1 to i32
    %c0_i32_0 = arith.constant 0 : i32
    %2 = arith.cmpi ne, %1, %c0_i32_0 : i32
    scf.if %2 {
      %cst_24 = arith.constant 0.000000e+00 : f32
      %33 = vector.broadcast %cst_24 : f32 to vector<33x16xf32>
      %c0_25 = arith.constant 0 : index
      %c0_26 = arith.constant 0 : index
      %34 = vector.load %arg11[%c0_25, %c0_26] : memref<33x16xf32, #tpu.memory_space<vmem>>, vector<33x16xf32>
      tpu.vector_store %arg11[%c0_25, %c0_26], %33 {strides = array<i32>} : memref<33x16xf32, #tpu.memory_space<vmem>>, vector<33x16xf32>,
    } else {
    }
    %c0 = arith.constant 0 : index
    %c0_1 = arith.constant 0 : index
    %c0_2 = arith.constant 0 : index
    %3 = vector.load %arg2[%c0, %c0_1, %c0_2] : memref<1x32x16xf32, #tpu.memory_space<vmem>>, vector<1x32x16xf32>
    %4 = vector.shape_cast %3 : vector<1x32x16xf32> to vector<32x16xf32>
    %c0_3 = arith.constant 0 : index
    %c0_4 = arith.constant 0 : index
    %c0_5 = arith.constant 0 : index
    %5 = vector.load %arg3[%c0_3, %c0_4, %c0_5] : memref<1x32x16xf32, #tpu.memory_space<vmem>>, vector<1x32x16xf32>
    %6 = vector.shape_cast %5 : vector<1x32x16xf32> to vector<32x16xf32>
    %c0_6 = arith.constant 0 : index
    %c0_7 = arith.constant 0 : index
    %7 = vector.load %arg4[%c0_6, %c0_7] : memref<32x32xf32, #tpu.memory_space<vmem>>, vector<32x32xf32>
    %cst = arith.constant dense<0.000000e+00> : vector<16x32xf32>
    %8 = tpu.matmul %4, %7, %cst {dimension_numbers = #tpu.dot_dimension_numbers<[0], [0], [1], [1], [0, 1, 1, 1], [], []>} : vector<32x16xf32>, vector<32x32xf32>, vector<16x32xf32> -> vector<16x32xf32>
    %cst_8 = arith.constant dense<0.000000e+00> : vector<16x16xf32>
    %9 = tpu.matmul %8, %6, %cst_8 {dimension_numbers = #tpu.dot_dimension_numbers<[1], [0], [0], [1], [0, 0, 1, 1], [], []>} : vector<16x32xf32>, vector<32x16xf32>, vector<16x16xf32> -> vector<16x16xf32>
    %cst_9 = arith.constant dense<0xFF800000> : vector<16xf32>
    %10 = vector.multi_reduction <maximumf>, %9, %cst_9 [1] : vector<16x16xf32> to vector<16xf32>
    %11 = vector.shape_cast %10 : vector<16xf32> to vector<16x1xf32>
    %12 = vector.broadcast %11 : vector<16x1xf32> to vector<16x16xf32>
    %13 = arith.subf %9, %12 : vector<16x16xf32>
    %14 = math.exp %13 : vector<16x16xf32>
    %cst_10 = arith.constant dense<0.000000e+00> : vector<16xf32>
    %15 = vector.multi_reduction <add>, %14, %cst_10 [1] : vector<16x16xf32> to vector<16xf32>
    %16 = vector.shape_cast %15 : vector<16xf32> to vector<16x1xf32>
    %cst_11 = arith.constant 1.000000e+00 : f32
    %17 = vector.broadcast %cst_11 : f32 to vector<16x1xf32>
    %18 = arith.divf %17, %16 : vector<16x1xf32>
    %19 = vector.broadcast %18 : vector<16x1xf32> to vector<16x16xf32>
    %20 = arith.mulf %14, %19 : vector<16x16xf32>
    %c0_12 = arith.constant 0 : index
    %c0_13 = arith.constant 0 : index
    %21 = vector.load %arg5[%c0_12, %c0_13] : memref<33x32xf32, #tpu.memory_space<vmem>>, vector<33x32xf32>
    %cst_14 = arith.constant dense<0.000000e+00> : vector<33x16xf32>
    %22 = tpu.matmul %21, %4, %cst_14 {dimension_numbers = #tpu.dot_dimension_numbers<[1], [0], [0], [1], [0, 0, 1, 1], [], []>} : vector<33x32xf32>, vector<32x16xf32>, vector<33x16xf32> -> vector<33x16xf32>
    %c0_15 = arith.constant 0 : index
    %c0_16 = arith.constant 0 : index
    %23 = vector.load %arg6[%c0_15, %c0_16] : memref<33x1xf32, #tpu.memory_space<vmem>>, vector<33x1xf32>
    %24 = vector.broadcast %23 : vector<33x1xf32> to vector<33x16xf32>
    %25 = arith.addf %22, %24 : vector<33x16xf32>
    %c0_17 = arith.constant 0 : index
    %c0_18 = arith.constant 0 : index
    %26 = vector.load %arg11[%c0_17, %c0_18] : memref<33x16xf32, #tpu.memory_space<vmem>>, vector<33x16xf32>
    %cst_19 = arith.constant dense<0.000000e+00> : vector<33x16xf32>
    %27 = tpu.matmul %25, %20, %cst_19 {dimension_numbers = #tpu.dot_dimension_numbers<[1], [0], [0], [1], [0, 0, 1, 1], [], []>} : vector<33x16xf32>, vector<16x16xf32>, vector<33x16xf32> -> vector<33x16xf32>
    %28 = arith.addf %26, %27 : vector<33x16xf32>
    %c0_20 = arith.constant 0 : index
    %c0_21 = arith.constant 0 : index
    %29 = vector.load %arg11[%c0_20, %c0_21] : memref<33x16xf32, #tpu.memory_space<vmem>>, vector<33x16xf32>
    tpu.vector_store %arg11[%c0_20, %c0_21], %28 {strides = array<i32>} : memref<33x16xf32, #tpu.memory_space<vmem>>, vector<33x16xf32>,
    %c0_i32_22 = arith.constant 0 : i32
    %30 = arith.cmpi eq, %arg1, %c0_i32_22 : i32
    %31 = arith.extui %30 : i1 to i32
    %c0_i32_23 = arith.constant 0 : i32
    %32 = arith.cmpi ne, %31, %c0_i32_23 : i32
    scf.if %32 {
      %c0_24 = arith.constant 0 : index
      %c0_25 = arith.constant 0 : index
      %33 = vector.load %arg11[%c0_24, %c0_25] : memref<33x16xf32, #tpu.memory_space<vmem>>, vector<33x16xf32>
      %34 = vector.extract_strided_slice %33 {offsets = [32, 0], sizes = [1, 16], strides = [1, 1]} : vector<33x16xf32> to vector<1x16xf32>
      %cst_26 = arith.constant 9.99999971E-10 : f32
      %35 = vector.broadcast %cst_26 : f32 to vector<1x16xf32>
      %36 = arith.addf %35, %34 : vector<1x16xf32>
      %cst_27 = arith.constant 1.000000e+00 : f32
      %37 = vector.broadcast %cst_27 : f32 to vector<1x16xf32>
      %38 = arith.divf %37, %36 : vector<1x16xf32>
      %39 = vector.extract_strided_slice %33 {offsets = [0, 0], sizes = [32, 16], strides = [1, 1]} : vector<33x16xf32> to vector<32x16xf32>
      %40 = vector.broadcast %38 : vector<1x16xf32> to vector<32x16xf32>
      %41 = arith.mulf %39, %40 : vector<32x16xf32>
      %42 = arith.subf %6, %41 : vector<32x16xf32>
      %c0_28 = arith.constant 0 : index
      %c0_29 = arith.constant 0 : index
      %43 = vector.load %arg7[%c0_28, %c0_29] : memref<32x32xf32, #tpu.memory_space<vmem>>, vector<32x32xf32>
      %cst_30 = arith.constant dense<0.000000e+00> : vector<32x16xf32>
      %44 = tpu.matmul %43, %42, %cst_30 {dimension_numbers = #tpu.dot_dimension_numbers<[1], [0], [0], [1], [0, 0, 1, 1], [], []>} : vector<32x32xf32>, vector<32x16xf32>, vector<32x16xf32> -> vector<32x16xf32>
      %c0_31 = arith.constant 0 : index
      %c0_32 = arith.constant 0 : index
      %45 = vector.load %arg8[%c0_31, %c0_32] : memref<32x1xf32, #tpu.memory_space<vmem>>, vector<32x1xf32>
      %46 = vector.broadcast %45 : vector<32x1xf32> to vector<32x16xf32>
      %47 = arith.addf %44, %46 : vector<32x16xf32>
      %c0_33 = arith.constant 0 : index
      %c0_34 = arith.constant 0 : index
      %c0_35 = arith.constant 0 : index
      %48 = vector.load %arg9[%c0_33, %c0_34, %c0_35] : memref<1x32x16xf32, #tpu.memory_space<vmem>>, vector<1x32x16xf32>
      %49 = vector.shape_cast %48 : vector<1x32x16xf32> to vector<32x16xf32>
      %50 = vector.shape_cast %47 : vector<32x16xf32> to vector<1x32x16xf32>
      tpu.vector_store %arg9[%c0_33, %c0_34, %c0_35], %50 {strides = array<i32>} : memref<1x32x16xf32, #tpu.memory_space<vmem>>, vector<1x32x16xf32>,
      %cst_36 = arith.constant dense<0.000000e+00> : vector<32xf32>
      %51 = vector.multi_reduction <add>, %47, %cst_36 [1] : vector<32x16xf32> to vector<32xf32>
      %52 = vector.shape_cast %51 : vector<32xf32> to vector<32x1xf32>
      %c0_37 = arith.constant 0 : index
      %c0_38 = arith.constant 0 : index
      %c0_39 = arith.constant 0 : index
      %53 = vector.load %arg10[%c0_37, %c0_38, %c0_39] : memref<1x32x2xf32, #tpu.memory_space<vmem>>, vector<1x32x1xf32>
      %54 = vector.shape_cast %53 : vector<1x32x1xf32> to vector<32x1xf32>
      %55 = vector.shape_cast %52 : vector<32x1xf32> to vector<1x32x1xf32>
      tpu.vector_store %arg10[%c0_37, %c0_38, %c0_39], %55 {strides = array<i32>} : memref<1x32x2xf32, #tpu.memory_space<vmem>>, vector<1x32x1xf32>,
      %56 = arith.mulf %47, %47 : vector<32x16xf32>
      %cst_40 = arith.constant dense<0.000000e+00> : vector<32xf32>
      %57 = vector.multi_reduction <add>, %56, %cst_40 [1] : vector<32x16xf32> to vector<32xf32>
      %58 = vector.shape_cast %57 : vector<32xf32> to vector<32x1xf32>
      %c0_41 = arith.constant 0 : index
      %c0_42 = arith.constant 0 : index
      %c1 = arith.constant 1 : index
      %59 = vector.load %arg10[%c0_41, %c0_42, %c1] : memref<1x32x2xf32, #tpu.memory_space<vmem>>, vector<1x32x1xf32>
      %60 = vector.shape_cast %59 : vector<1x32x1xf32> to vector<32x1xf32>
      %61 = vector.shape_cast %58 : vector<32x1xf32> to vector<1x32x1xf32>
      tpu.vector_store %arg10[%c0_41, %c0_42, %c1], %61 {strides = array<i32>} : memref<1x32x2xf32, #tpu.memory_space<vmem>>, vector<1x32x1xf32>,
    } else {
    }
    return
  }
  func.func @transform_0(%arg0: i32, %arg1: i32) -> (i32, i32, i32) {
    %c0_i32 = arith.constant 0 : i32
    %c0_i32_0 = arith.constant 0 : i32
    return %arg0, %c0_i32, %arg1 : i32, i32, i32
  }
  func.func @transform_1(%arg0: i32, %arg1: i32) -> (i32, i32, i32) {
    %c0_i32 = arith.constant 0 : i32
    %c0_i32_0 = arith.constant 0 : i32
    %c0_i32_1 = arith.constant 0 : i32
    return %arg0, %c0_i32, %c0_i32_0 : i32, i32, i32
  }
  func.func @transform_2(%arg0: i32, %arg1: i32) -> (i32, i32) {
    %c0_i32 = arith.constant 0 : i32
    %c0_i32_0 = arith.constant 0 : i32
    %c0_i32_1 = arith.constant 0 : i32
    return %c0_i32, %c0_i32_0 : i32, i32
  }
  func.func @transform_3(%arg0: i32, %arg1: i32) -> (i32, i32) {
    %c0_i32 = arith.constant 0 : i32
    %c0_i32_0 = arith.constant 0 : i32
    %c0_i32_1 = arith.constant 0 : i32
    return %c0_i32, %c0_i32_0 : i32, i32
  }
  func.func @transform_4(%arg0: i32, %arg1: i32) -> (i32, i32) {
    %c0_i32 = arith.constant 0 : i32
    %c0_i32_0 = arith.constant 0 : i32
    %c0_i32_1 = arith.constant 0 : i32
    return %c0_i32, %c0_i32_0 : i32, i32
  }
  func.func @transform_5(%arg0: i32, %arg1: i32) -> (i32, i32) {
    %c0_i32 = arith.constant 0 : i32
    %c0_i32_0 = arith.constant 0 : i32
    %c0_i32_1 = arith.constant 0 : i32
    return %c0_i32, %c0_i32_0 : i32, i32
  }
  func.func @transform_6(%arg0: i32, %arg1: i32) -> (i32, i32) {
    %c0_i32 = arith.constant 0 : i32
    %c0_i32_0 = arith.constant 0 : i32
    %c0_i32_1 = arith.constant 0 : i32
    return %c0_i32, %c0_i32_0 : i32, i32
  }
  func.func @transform_7(%arg0: i32, %arg1: i32) -> (i32, i32, i32) {
    %c0_i32 = arith.constant 0 : i32
    %c0_i32_0 = arith.constant 0 : i32
    %c0_i32_1 = arith.constant 0 : i32
    return %arg0, %c0_i32, %c0_i32_0 : i32, i32, i32
  }
  func.func @transform_8(%arg0: i32, %arg1: i32) -> (i32, i32, i32) {
    %c0_i32 = arith.constant 0 : i32
    %c0_i32_0 = arith.constant 0 : i32
    %c0_i32_1 = arith.constant 0 : i32
    return %arg0, %c0_i32, %c0_i32_0 : i32, i32, i32
  }
}

module attributes {stable_mosaic.version = 11 : i64} {
  func.func @_sa_pass2_kernel(%arg0: i32, %arg1: i32, %arg2: memref<1x32x16xf32, #tpu.memory_space<vmem>>, %arg3: memref<1x32x16xf32, #tpu.memory_space<vmem>>, %arg4: memref<32x1xf32, #tpu.memory_space<vmem>>, %arg5: memref<32x1xf32, #tpu.memory_space<vmem>>, %arg6: memref<1x32x16xf32, #tpu.memory_space<vmem>>) attributes {dimension_semantics = [#tpu.dimension_semantics<parallel>, #tpu.dimension_semantics<parallel>], iteration_bounds = array<i64: 2, 1>, scalar_prefetch = 0 : i64, scratch_operands = 0 : i64, tpu.core_type = #tpu.core_type<tc>, window_params = [{transform_indices = @transform_0, window_bounds = array<i64: 1, 32, 16>}, {transform_indices = @transform_1, window_bounds = array<i64: 1, 32, 16>}, {pipeline_mode = #tpu.pipeline_mode<synchronous>, transform_indices = @transform_2, window_bounds = array<i64: 32, 1>}, {pipeline_mode = #tpu.pipeline_mode<synchronous>, transform_indices = @transform_3, window_bounds = array<i64: 32, 1>}, {transform_indices = @transform_4, window_bounds = array<i64: 1, 32, 16>}]} {
    %c0 = arith.constant 0 : index
    %c0_0 = arith.constant 0 : index
    %c0_1 = arith.constant 0 : index
    %0 = vector.load %arg3[%c0, %c0_0, %c0_1] : memref<1x32x16xf32, #tpu.memory_space<vmem>>, vector<1x32x16xf32>
    %1 = vector.shape_cast %0 : vector<1x32x16xf32> to vector<32x16xf32>
    %c0_2 = arith.constant 0 : index
    %c0_3 = arith.constant 0 : index
    %2 = vector.load %arg4[%c0_2, %c0_3] : memref<32x1xf32, #tpu.memory_space<vmem>>, vector<32x1xf32>
    %3 = vector.broadcast %2 : vector<32x1xf32> to vector<32x16xf32>
    %4 = arith.mulf %1, %3 : vector<32x16xf32>
    %c0_4 = arith.constant 0 : index
    %c0_5 = arith.constant 0 : index
    %5 = vector.load %arg5[%c0_4, %c0_5] : memref<32x1xf32, #tpu.memory_space<vmem>>, vector<32x1xf32>
    %6 = vector.broadcast %5 : vector<32x1xf32> to vector<32x16xf32>
    %7 = arith.addf %4, %6 : vector<32x16xf32>
    %c0_6 = arith.constant 0 : index
    %c0_7 = arith.constant 0 : index
    %c0_8 = arith.constant 0 : index
    %8 = vector.load %arg2[%c0_6, %c0_7, %c0_8] : memref<1x32x16xf32, #tpu.memory_space<vmem>>, vector<1x32x16xf32>
    %9 = vector.shape_cast %8 : vector<1x32x16xf32> to vector<32x16xf32>
    %cst = arith.constant 0.000000e+00 : f32
    %10 = vector.broadcast %cst : f32 to vector<32x16xf32>
    %11 = arith.maximumf %7, %10 : vector<32x16xf32>
    %12 = arith.addf %9, %11 : vector<32x16xf32>
    %c0_9 = arith.constant 0 : index
    %c0_10 = arith.constant 0 : index
    %c0_11 = arith.constant 0 : index
    %13 = vector.load %arg6[%c0_9, %c0_10, %c0_11] : memref<1x32x16xf32, #tpu.memory_space<vmem>>, vector<1x32x16xf32>
    %14 = vector.shape_cast %13 : vector<1x32x16xf32> to vector<32x16xf32>
    %15 = vector.shape_cast %12 : vector<32x16xf32> to vector<1x32x16xf32>
    tpu.vector_store %arg6[%c0_9, %c0_10, %c0_11], %15 {strides = array<i32>} : memref<1x32x16xf32, #tpu.memory_space<vmem>>, vector<1x32x16xf32>,
    return
  }
  func.func @transform_0(%arg0: i32, %arg1: i32) -> (i32, i32, i32) {
    %c0_i32 = arith.constant 0 : i32
    %c0_i32_0 = arith.constant 0 : i32
    return %arg0, %c0_i32, %arg1 : i32, i32, i32
  }
  func.func @transform_1(%arg0: i32, %arg1: i32) -> (i32, i32, i32) {
    %c0_i32 = arith.constant 0 : i32
    %c0_i32_0 = arith.constant 0 : i32
    return %arg0, %c0_i32, %arg1 : i32, i32, i32
  }
  func.func @transform_2(%arg0: i32, %arg1: i32) -> (i32, i32) {
    %c0_i32 = arith.constant 0 : i32
    %c0_i32_0 = arith.constant 0 : i32
    %c0_i32_1 = arith.constant 0 : i32
    return %c0_i32, %c0_i32_0 : i32, i32
  }
  func.func @transform_3(%arg0: i32, %arg1: i32) -> (i32, i32) {
    %c0_i32 = arith.constant 0 : i32
    %c0_i32_0 = arith.constant 0 : i32
    %c0_i32_1 = arith.constant 0 : i32
    return %c0_i32, %c0_i32_0 : i32, i32
  }
  func.func @transform_4(%arg0: i32, %arg1: i32) -> (i32, i32, i32) {
    %c0_i32 = arith.constant 0 : i32
    %c0_i32_0 = arith.constant 0 : i32
    return %arg0, %c0_i32, %arg1 : i32, i32, i32
  }
}

</mosaic_0001>

<llo_original>
// kernel: sa_layer.3
$region0: #{sa_layer.3}
  #allocation0 [shape = 'u32[]', space=smem, size = 0x4, offset = 0x4, fixed_abs, tag = 'smem constant byte address 0x4 - core index']
  #allocation1 [shape = 'u32[144,128]{1,0:T(1,128)}', space=vmem, size = 0x12000, scoped, tag = 'internal scratch']
  %s0 = inlined_call_operand.vmem [shape: f32[2,32,16], index: 0, kind: input, shape index: {}]
  %s1 = inlined_call_operand.vmem [shape: f32[2,32,16], index: 1, kind: input, shape index: {}, may-alias: {1,4}]
  %s2 = inlined_call_operand.vmem [shape: f32[32,1], index: 2, kind: input, shape index: {}]
  %s3 = inlined_call_operand.vmem [shape: f32[32,1], index: 3, kind: input, shape index: {}]
  %s4 = inlined_call_operand.vmem [shape: f32[2,32,16], index: 4, kind: output, shape index: {}, may-alias: {1,4}]
  %s5 = sld [smem:[#allocation0]]
  $region49: #{sa_layer.3} parent=0
    _
  %s7 = ssub.s32 1, %s5
  %s8 = scalar_select 0, %s7, %s5
  loop: start=0, step=1, limit=4
  $region2: #{sa_layer.3} parent=0 // loop_pre_header
    _
  $region3: #{sa_layer.3} parent=0 // loop_header
    %s10 = sphi 0, %s14
    %p11 = scmp.ge.s32.totalorder %s10, 4
    %s17 = sphi 0, %s29
    %s18 = sphi 0, %s25
    %s19 = sphi 0, %s17
    %s20 = sphi 0, %s18
    %s21 = sphi 0, %s19
    %s22 = sphi 0, %s20
    %s34 = sphi 0, %s36
    %s37 = sphi 0, %s34
    %s38 = sphi 0, %s37
    %s54 = sphi 0, %s38
    %s62 = sphi 0, %s64
    %s65 = sphi 0, %s62
    %s66 = sphi 0, %s65
    %s82 = sphi 0, %s66
    %s86 = sphi 0, %s86
    %s88 = sphi 0, %s86
    %s89 = sphi 0, %s88
    %s103 = sphi 0, %s89
    %s107 = sphi 0, %s107
    %s109 = sphi 0, %s107
    %s110 = sphi 0, %s109
    %s124 = sphi 0, %s110
    %s132 = sphi 0, %s134
    %s135 = sphi 0, %s132
    %s136 = sphi 0, %s135
    %s152 = sphi 0, %s136
  $region4: #{sa_layer.3} parent=0 // loop_header_branch
    %13 = sbr.rel (%p11) target = $region8
  $region5: #{sa_layer.3} parent=0 // loop_body
    %s15 = ssub.s32 %s10, 1
    %s16 = ssub.s32 %s10, 2
    %s23 = sadd.s32 1, %s18
    %p24 = scmp.ge.s32.totalorder %s23, 1
    %s25 = scalar_select %p24, 0, %s23
    %s26 = sadd.s32 1, %s17
    %s27 = scalar_select %p24, %s26, %s17
    %p28 = scmp.ge.s32.totalorder %s27, 2
    %s29 = scalar_select %p28, 0, %s27
    %s30 = ssub.s32 %s17, %s29
    %s31 = ssub.s32 %s18, %s25
    %s32 = sor.u32 %s30, %s31
    %p33 = scmp.eq.s32.totalorder %s32, 0
    %s35 = sadd.s32 %s34, 1
    %s36 = scalar_select %p33, %s34, %s35
    %p39 = pneg %p33
    %p40 = scmp.eq.s32.totalorder %s10, 1
    %p41 = por %p39, %p40
    %p42 = scmp.ne.s32.totalorder %s34, %s37
    %p43 = scmp.eq.s32.totalorder %s10, 0
    %p44 = por %p42, %p43
    %p45 = scmp.ne.s32.totalorder %s34, %s37
    %p46 = scmp.eq.s32.totalorder %s15, 1
    %p47 = por %p45, %p46
    %p48 = scmp.ne.s32.totalorder %s37, %s38
    %p49 = scmp.eq.s32.totalorder %s15, 0
    %p50 = por %p48, %p49
    %p51 = scmp.ne.s32.totalorder %s37, %s38
    %p52 = scmp.eq.s32.totalorder %s16, 1
    %p53 = por %p51, %p52
    %p55 = scmp.ne.s32.totalorder %s38, %s54
    %p56 = scmp.eq.s32.totalorder %s16, 0
    %p57 = por %p55, %p56
    %s58 = ssub.s32 %s17, %s29
    %s59 = ssub.s32 %s18, %s25
    %s60 = sor.u32 %s58, %s59
    %p61 = scmp.eq.s32.totalorder %s60, 0
    %s63 = sadd.s32 %s62, 1
    %s64 = scalar_select %p61, %s62, %s63
    %p67 = pneg %p61
    %p68 = scmp.eq.s32.totalorder %s10, 1
    %p69 = por %p67, %p68
    %p70 = scmp.ne.s32.totalorder %s62, %s65
    %p71 = scmp.eq.s32.totalorder %s10, 0
    %p72 = por %p70, %p71
    %p73 = scmp.ne.s32.totalorder %s62, %s65
    %p74 = scmp.eq.s32.totalorder %s15, 1
    %p75 = por %p73, %p74
    %p76 = scmp.ne.s32.totalorder %s65, %s66
    %p77 = scmp.eq.s32.totalorder %s15, 0
    %p78 = por %p76, %p77
    %p79 = scmp.ne.s32.totalorder %s65, %s66
    %p80 = scmp.eq.s32.totalorder %s16, 1
    %p81 = por %p79, %p80
    %p83 = scmp.ne.s32.totalorder %s66, %s82
    %p84 = scmp.eq.s32.totalorder %s16, 0
    %p85 = por %p83, %p84
    %s87 = sadd.s32 %s86, 1
    %p90 = scmp.eq.s32.totalorder %s10, 1
    %p91 = scmp.ne.s32.totalorder %s86, %s88
    %p92 = scmp.eq.s32.totalorder %s10, 0
    %p93 = por %p91, %p92
    %p94 = scmp.ne.s32.totalorder %s86, %s88
    %p95 = scmp.eq.s32.totalorder %s15, 1
    %p96 = por %p94, %p95
    %p97 = scmp.ne.s32.totalorder %s88, %s89
    %p98 = scmp.eq.s32.totalorder %s15, 0
    %p99 = por %p97, %p98
    %p100 = scmp.ne.s32.totalorder %s88, %s89
    %p101 = scmp.eq.s32.totalorder %s16, 1
    %p102 = por %p100, %p101
    %p104 = scmp.ne.s32.totalorder %s89, %s103
    %p105 = scmp.eq.s32.totalorder %s16, 0
    %p106 = por %p104, %p105
    %s108 = sadd.s32 %s107, 1
    %p111 = scmp.eq.s32.totalorder %s10, 1
    %p112 = scmp.ne.s32.totalorder %s107, %s109
    %p113 = scmp.eq.s32.totalorder %s10, 0
    %p114 = por %p112, %p113
    %p115 = scmp.ne.s32.totalorder %s107, %s109
    %p116 = scmp.eq.s32.totalorder %s15, 1
    %p117 = por %p115, %p116
    %p118 = scmp.ne.s32.totalorder %s109, %s110
    %p119 = scmp.eq.s32.totalorder %s15, 0
    %p120 = por %p118, %p119
    %p121 = scmp.ne.s32.totalorder %s109, %s110
    %p122 = scmp.eq.s32.totalorder %s16, 1
    %p123 = por %p121, %p122
    %p125 = scmp.ne.s32.totalorder %s110, %s124
    %p126 = scmp.eq.s32.totalorder %s16, 0
    %p127 = por %p125, %p126
    %s128 = ssub.s32 %s17, %s29
    %s129 = ssub.s32 %s18, %s25
    %s130 = sor.u32 %s128, %s129
    %p131 = scmp.eq.s32.totalorder %s130, 0
    %s133 = sadd.s32 %s132, 1
    %s134 = scalar_select %p131, %s132, %s133
    %p137 = pneg %p131
    %p138 = scmp.eq.s32.totalorder %s10, 1
    %p139 = por %p137, %p138
    %p140 = scmp.ne.s32.totalorder %s132, %s135
    %p141 = scmp.eq.s32.totalorder %s10, 0
    %p142 = por %p140, %p141
    %p143 = scmp.ne.s32.totalorder %s132, %s135
    %p144 = scmp.eq.s32.totalorder %s15, 1
    %p145 = por %p143, %p144
    %p146 = scmp.ne.s32.totalorder %s135, %s136
    %p147 = scmp.eq.s32.totalorder %s15, 0
    %p148 = por %p146, %p147
    %p149 = scmp.ne.s32.totalorder %s135, %s136
    %p150 = scmp.eq.s32.totalorder %s16, 1
    %p151 = por %p149, %p150
    %p153 = scmp.ne.s32.totalorder %s136, %s152
    %p154 = scmp.eq.s32.totalorder %s16, 0
    %p155 = por %p153, %p154
    %p156 = scmp.le.s32.totalorder 1, %s10
    %p157 = scmp.lt.s32.totalorder %s10, 3
    %p158 = pnand %p156, %p157
    %p159 = pneg %p158
    // Predicated region
    $region9: #{sa_layer.3} parent=5 // pred_check
      _
    $region10: #{sa_layer.3} parent=5 // pred_check_branch
      %161 = sbr.rel (%p158) target = $region12
    $region11: #{sa_layer.3} parent=5 // pred_region
      %s162 = ssub.s32 %s10, 1
      // Predicated region
      $region13: #{sa_layer.3} parent=11 // pred_check
        %p163 = pneg %p99
      $region14: #{sa_layer.3} parent=11 // pred_check_branch
        %165 = sbr.rel (%p163) target = $region16
      $region15: #{sa_layer.3} parent=11 // pred_region
        _
      $region16: #{sa_layer.3} parent=11 // pred_fallthru
        _
      // Predicated region
      $region17: #{sa_layer.3} parent=11 // pred_check
        %p166 = pneg %p120
      $region18: #{sa_layer.3} parent=11 // pred_check_branch
        %168 = sbr.rel (%p166) target = $region20
      $region19: #{sa_layer.3} parent=11 // pred_region
        _
      $region20: #{sa_layer.3} parent=11 // pred_fallthru
        _
    $region12: #{sa_layer.3} parent=5 // pred_fallthru
      _
    %p169 = scmp.lt.s32.totalorder %s10, 2
    // Predicated region
    $region21: #{sa_layer.3} parent=5 // pred_check
      %p170 = pneg %p169
    $region22: #{sa_layer.3} parent=5 // pred_check_branch
      %172 = sbr.rel (%p170) target = $region24
    $region23: #{sa_layer.3} parent=5 // pred_region
      // Predicated region
      $region25: #{sa_layer.3} parent=23 // pred_check
        %p173 = pneg %p44
      $region26: #{sa_layer.3} parent=23 // pred_check_branch
        %175 = sbr.rel (%p173) target = $region28
      $region27: #{sa_layer.3} parent=23 // pred_region
        %p176 = scmp.lt.s32.totalorder %s17, 1
        %s177 = scalar_select %p176, %s17, 1
        %p178 = scmp.lt.s32.totalorder %s18, 0
        %s179 = scalar_select %p178, %s18, 0
        %s180 = smul.addr %s177, 4
        %s181 = sadd.s32 %s179, %s180
        %s182 = smul.addr %s181, 8
        %s183 = scalar_lea.vmem %s0, %s182
      $region28: #{sa_layer.3} parent=23 // pred_fallthru
        _
      // Predicated region
      $region29: #{sa_layer.3} parent=23 // pred_check
        %p184 = pneg %p72
      $region30: #{sa_layer.3} parent=23 // pred_check_branch
        %186 = sbr.rel (%p184) target = $region32
      $region31: #{sa_layer.3} parent=23 // pred_region
        %p187 = scmp.lt.s32.totalorder %s17, 1
        %s188 = scalar_select %p187, %s17, 1
        %p189 = scmp.lt.s32.totalorder %s18, 0
        %s190 = scalar_select %p189, %s18, 0
        %s191 = smul.addr %s188, 4
        %s192 = sadd.s32 %s190, %s191
        %s193 = smul.addr %s192, 8
        %s194 = scalar_lea.vmem %s1, %s193
      $region32: #{sa_layer.3} parent=23 // pred_fallthru
        _
    $region24: #{sa_layer.3} parent=5 // pred_fallthru
      _
    %p195 = scmp.le.s32.totalorder 1, %s10
    %p196 = scmp.lt.s32.totalorder %s10, 3
    %p197 = pnand %p195, %p196
    %p198 = pneg %p197
    // Predicated region
    $region33: #{sa_layer.3} parent=5 // pred_check
      _
    $region34: #{sa_layer.3} parent=5 // pred_check_branch
      %200 = sbr.rel (%p197) target = $region36
    $region35: #{sa_layer.3} parent=5 // pred_region
      %s201 = ssub.s32 %s10, 1
      %p202 = scmp.lt.s32.totalorder %s19, 1
      %s203 = scalar_select %p202, %s19, 1
      %p204 = scmp.lt.s32.totalorder %s20, 0
      %s205 = scalar_select %p204, %s20, 0
      %s206 = smul.addr %s203, 4
      %s207 = sadd.s32 %s205, %s206
      %s208 = smul.addr %s207, 8
      %s209 = scalar_lea.vmem %s0, %s208
      %p210 = pneg %p50
      %p211 = pneg %p47
      %p212 = scmp.lt.s32.totalorder %s19, 1
      %s213 = scalar_select %p212, %s19, 1
      %p214 = scmp.lt.s32.totalorder %s20, 0
      %s215 = scalar_select %p214, %s20, 0
      %s216 = smul.addr %s213, 4
      %s217 = sadd.s32 %s215, %s216
      %s218 = smul.addr %s217, 8
      %s219 = scalar_lea.vmem %s1, %s218
      %p220 = pneg %p78
      %p221 = pneg %p75
      %p222 = pneg %p99
      %p223 = pneg %p96
      %p224 = pneg %p120
      %p225 = pneg %p117
      %p226 = pneg %p148
      %p227 = pneg %p145
      %p228 = scmp.lt.s32.totalorder %s19, 1
      %s229 = scalar_select %p228, %s19, 1
      %p230 = scmp.lt.s32.totalorder %s20, 0
      %s231 = scalar_select %p230, %s20, 0
      %s232 = smul.addr %s229, 4
      %s233 = sadd.s32 %s231, %s232
      %s234 = smul.addr %s233, 8
      %s235 = scalar_lea.vmem %s4, %s234
      %p236 = scmp.lt.s32.totalorder %s19, 1
      %s237 = scalar_select %p236, %s19, 1
      %p238 = scmp.lt.s32.totalorder %s20, 0
      %s239 = scalar_select %p238, %s20, 0
      %s240 = smul.addr %s237, 4
      %s241 = sadd.s32 %s239, %s240
      %s242 = smul.addr %s241, 8
      %s243 = scalar_lea.vmem %s0, %s242
      %p244 = scmp.lt.s32.totalorder %s19, 1
      %s245 = scalar_select %p244, %s19, 1
      %p246 = scmp.lt.s32.totalorder %s20, 0
      %s247 = scalar_select %p246, %s20, 0
      %s248 = smul.addr %s245, 4
      %s249 = sadd.s32 %s247, %s248
      %s250 = smul.addr %s249, 8
      %s251 = scalar_lea.vmem %s1, %s250
      %p252 = scmp.lt.s32.totalorder %s19, 1
      %s253 = scalar_select %p252, %s19, 1
      %p254 = scmp.lt.s32.totalorder %s20, 0
      %s255 = scalar_select %p254, %s20, 0
      %s256 = smul.addr %s253, 4
      %s257 = sadd.s32 %s255, %s256
      %s258 = smul.addr %s257, 8
      %s259 = scalar_lea.vmem %s4, %s258
      %v260 = vld [vmem:[%s251] sm:$0xff]
      %v261 = vld [vmem:[%s251 + $0x8] sm:$0xff]
      %v262 = vld [vmem:[%s251 + $0x10] sm:$0xff]
      %v263 = vld [vmem:[%s251 + $0x18] sm:$0xff]
      %v264 = vld [vmem:[%s2] sm:$0xff]
      %v265 = vld [vmem:[%s2 + $0x8] sm:$0xff]
      %v266 = vld [vmem:[%s2 + $0x10] sm:$0xff]
      %v267 = vld [vmem:[%s2 + $0x18] sm:$0xff]
      %269 = vset.pattern.permute.xlu0 0
      %270 = vperm.xlu0 %269, %v264
      %v271 = vpop.permute.xlu0 %270
      %274 = vset.pattern.permute.xlu0 0
      %275 = vperm.xlu0 %274, %v265
      %v276 = vpop.permute.xlu0 %275
      %279 = vset.pattern.permute.xlu0 0
      %280 = vperm.xlu0 %279, %v266
      %v281 = vpop.permute.xlu0 %280
      %284 = vset.pattern.permute.xlu0 0
      %285 = vperm.xlu0 %284, %v267
      %v286 = vpop.permute.xlu0 %285
      %v288 = vmul.f32 %v260, %v271
      %v289 = vmul.f32 %v261, %v276
      %v290 = vmul.f32 %v262, %v281
      %v291 = vmul.f32 %v263, %v286
      %v292 = vld [vmem:[%s3] sm:$0xff]
      %v293 = vld [vmem:[%s3 + $0x8] sm:$0xff]
      %v294 = vld [vmem:[%s3 + $0x10] sm:$0xff]
      %v295 = vld [vmem:[%s3 + $0x18] sm:$0xff]
      %297 = vset.pattern.permute.xlu0 0
      %298 = vperm.xlu0 %297, %v292
      %v299 = vpop.permute.xlu0 %298
      %302 = vset.pattern.permute.xlu0 0
      %303 = vperm.xlu0 %302, %v293
      %v304 = vpop.permute.xlu0 %303
      %307 = vset.pattern.permute.xlu0 0
      %308 = vperm.xlu0 %307, %v294
      %v309 = vpop.permute.xlu0 %308
      %312 = vset.pattern.permute.xlu0 0
      %313 = vperm.xlu0 %312, %v295
      %v314 = vpop.permute.xlu0 %313
      %v316 = vadd.f32 %v288, %v299
      %v317 = vadd.f32 %v289, %v304
      %v318 = vadd.f32 %v290, %v309
      %v319 = vadd.f32 %v291, %v314
      %v320 = vld [vmem:[%s243] sm:$0xff]
      %v321 = vld [vmem:[%s243 + $0x8] sm:$0xff]
      %v322 = vld [vmem:[%s243 + $0x10] sm:$0xff]
      %v323 = vld [vmem:[%s243 + $0x18] sm:$0xff]
      %v324 = vmax.f32 %v316, 0.0
      %v325 = vmax.f32 %v317, 0.0
      %v326 = vmax.f32 %v318, 0.0
      %v327 = vmax.f32 %v319, 0.0
      %v328 = vadd.f32 %v320, %v324
      %v329 = vadd.f32 %v321, %v325
      %v330 = vadd.f32 %v322, %v326
      %v331 = vadd.f32 %v323, %v327
      %vm332 = vcmask 130048
      %333 = vst.msk [vmem:[%s259] sm:$0xff] %vm332, %v328
      %334 = vst.msk [vmem:[%s259 + $0x8] sm:$0xff] %vm332, %v329
      %335 = vst.msk [vmem:[%s259 + $0x10] sm:$0xff] %vm332, %v330
      %336 = vst.msk [vmem:[%s259 + $0x18] sm:$0xff] %vm332, %v331
      %p337 = scmp.lt.s32.totalorder %s19, 1
      %s338 = scalar_select %p337, %s19, 1
      %p339 = scmp.lt.s32.totalorder %s20, 0
      %s340 = scalar_select %p339, %s20, 0
      %s341 = smul.addr %s338, 4
      %s342 = sadd.s32 %s340, %s341
      %s343 = smul.addr %s342, 8
      %s344 = scalar_lea.vmem %s4, %s343
      // Predicated region
      $region37: #{sa_layer.3} parent=35 // pred_check
        %p345 = pneg %p145
      $region38: #{sa_layer.3} parent=35 // pred_check_branch
        %347 = sbr.rel (%p345) target = $region40
      $region39: #{sa_layer.3} parent=35 // pred_region
        _
      $region40: #{sa_layer.3} parent=35 // pred_fallthru
        _
    $region36: #{sa_layer.3} parent=5 // pred_fallthru
      _
    %p348 = scmp.le.s32.totalorder 2, %s10
    // Predicated region
    $region41: #{sa_layer.3} parent=5 // pred_check
      %p349 = pneg %p348
    $region42: #{sa_layer.3} parent=5 // pred_check_branch
      %351 = sbr.rel (%p349) target = $region44
    $region43: #{sa_layer.3} parent=5 // pred_region
      %s352 = ssub.s32 %s10, 2
      // Predicated region
      $region45: #{sa_layer.3} parent=43 // pred_check
        %p353 = pneg %p151
      $region46: #{sa_layer.3} parent=43 // pred_check_branch
        %355 = sbr.rel (%p353) target = $region48
      $region47: #{sa_layer.3} parent=43 // pred_region
        %p356 = scmp.lt.s32.totalorder %s21, 1
        %s357 = scalar_select %p356, %s21, 1
        %p358 = scmp.lt.s32.totalorder %s22, 0
        %s359 = scalar_select %p358, %s22, 0
        %s360 = smul.addr %s357, 4
        %s361 = sadd.s32 %s359, %s360
        %s362 = smul.addr %s361, 8
        %s363 = scalar_lea.vmem %s4, %s362
      $region48: #{sa_layer.3} parent=43 // pred_fallthru
        _
    $region44: #{sa_layer.3} parent=5 // pred_fallthru
      _
  $region6: #{sa_layer.3} parent=0 // loop_footer
    %s14 = sadd.s32 1, %s10
  $region7: #{sa_layer.3} parent=0 // loop_footer_branch
    %9 = sbr.rel target = $region3
  $region8: #{sa_layer.3} parent=0 // loop_exit
    _

// kernel: sa_layer.2
$region0: #{sa_layer.2}
  #allocation0 [shape = 'u32[]', space=smem, size = 0x4, offset = 0x4, fixed_abs, tag = 'smem constant byte address 0x4 - core index']
  #allocation1 [shape = 'u32[144,128]{1,0:T(1,128)}', space=vmem, size = 0x12000, scoped, tag = 'internal scratch']
  #allocation2 [shape = 'f32[33,16]{1,0:T(8,128)}', space=vmem, size = 0x5000, scoped, tag = 'scratch operand']
  %s0 = inlined_call_operand.vmem [shape: f32[2,32,16], index: 0, kind: input, shape index: {}, may-alias: {0,1}]
  %s1 = inlined_call_operand.vmem [shape: f32[2,32,16], index: 1, kind: input, shape index: {}, may-alias: {0,1}]
  %s2 = inlined_call_operand.vmem [shape: f32[32,32], index: 2, kind: input, shape index: {}]
  %s3 = inlined_call_operand.vmem [shape: f32[33,32], index: 3, kind: input, shape index: {}]
  %s4 = inlined_call_operand.vmem [shape: f32[33,1], index: 4, kind: input, shape index: {}]
  %s5 = inlined_call_operand.vmem [shape: f32[32,32], index: 5, kind: input, shape index: {}]
  %s6 = inlined_call_operand.vmem [shape: f32[32,1], index: 6, kind: input, shape index: {}]
  %s7 = inlined_call_operand.vmem [shape: f32[2,32,16], index: 7, kind: output, shape index: {0}]
  %s8 = inlined_call_operand.vmem [shape: f32[2,32,2], index: 8, kind: output, shape index: {1}]
  %9 = xla_tuple %s7, %s8
  %s10 = sld [smem:[#allocation0]]
  $region77: #{sa_layer.2} parent=0
    _
  %s12 = ssub.s32 1, %s10
  %s13 = scalar_select 0, %s12, %s10
  loop: start=0, step=1, limit=4
  $region2: #{sa_layer.2} parent=0 // loop_pre_header
    _
  $region3: #{sa_layer.2} parent=0 // loop_header
    %s15 = sphi 0, %s19
    %p16 = scmp.ge.s32.totalorder %s15, 4
    %s22 = sphi 0, %s34
    %s23 = sphi 0, %s30
    %s24 = sphi 0, %s22
    %s25 = sphi 0, %s23
    %s26 = sphi 0, %s24
    %s27 = sphi 0, %s25
    %s39 = sphi 0, %s41
    %s42 = sphi 0, %s39
    %s43 = sphi 0, %s42
    %s59 = sphi 0, %s43
    %s65 = sphi 0, %s67
    %s68 = sphi 0, %s65
    %s69 = sphi 0, %s68
    %s85 = sphi 0, %s69
    %s89 = sphi 0, %s89
    %s91 = sphi 0, %s89
    %s92 = sphi 0, %s91
    %s106 = sphi 0, %s92
    %s110 = sphi 0, %s110
    %s112 = sphi 0, %s110
    %s113 = sphi 0, %s112
    %s127 = sphi 0, %s113
    %s131 = sphi 0, %s131
    %s133 = sphi 0, %s131
    %s134 = sphi 0, %s133
    %s148 = sphi 0, %s134
    %s152 = sphi 0, %s152
    %s154 = sphi 0, %s152
    %s155 = sphi 0, %s154
    %s169 = sphi 0, %s155
    %s173 = sphi 0, %s173
    %s175 = sphi 0, %s173
    %s176 = sphi 0, %s175
    %s190 = sphi 0, %s176
    %s196 = sphi 0, %s198
    %s199 = sphi 0, %s196
    %s200 = sphi 0, %s199
    %s216 = sphi 0, %s200
    %s222 = sphi 0, %s224
    %s225 = sphi 0, %s222
    %s226 = sphi 0, %s225
    %s242 = sphi 0, %s226
  $region4: #{sa_layer.2} parent=0 // loop_header_branch
    %18 = sbr.rel (%p16) target = $region8
  $region5: #{sa_layer.2} parent=0 // loop_body
    %s20 = ssub.s32 %s15, 1
    %s21 = ssub.s32 %s15, 2
    %s28 = sadd.s32 1, %s23
    %p29 = scmp.ge.s32.totalorder %s28, 1
    %s30 = scalar_select %p29, 0, %s28
    %s31 = sadd.s32 1, %s22
    %s32 = scalar_select %p29, %s31, %s22
    %p33 = scmp.ge.s32.totalorder %s32, 2
    %s34 = scalar_select %p33, 0, %s32
    %s35 = ssub.s32 %s22, %s34
    %s36 = ssub.s32 %s23, %s30
    %s37 = sor.u32 %s35, %s36
    %p38 = scmp.eq.s32.totalorder %s37, 0
    %s40 = sadd.s32 %s39, 1
    %s41 = scalar_select %p38, %s39, %s40
    %p44 = pneg %p38
    %p45 = scmp.eq.s32.totalorder %s15, 1
    %p46 = por %p44, %p45
    %p47 = scmp.ne.s32.totalorder %s39, %s42
    %p48 = scmp.eq.s32.totalorder %s15, 0
    %p49 = por %p47, %p48
    %p50 = scmp.ne.s32.totalorder %s39, %s42
    %p51 = scmp.eq.s32.totalorder %s20, 1
    %p52 = por %p50, %p51
    %p53 = scmp.ne.s32.totalorder %s42, %s43
    %p54 = scmp.eq.s32.totalorder %s20, 0
    %p55 = por %p53, %p54
    %p56 = scmp.ne.s32.totalorder %s42, %s43
    %p57 = scmp.eq.s32.totalorder %s21, 1
    %p58 = por %p56, %p57
    %p60 = scmp.ne.s32.totalorder %s43, %s59
    %p61 = scmp.eq.s32.totalorder %s21, 0
    %p62 = por %p60, %p61
    %s63 = ssub.s32 %s22, %s34
    %p64 = scmp.eq.s32.totalorder %s63, 0
    %s66 = sadd.s32 %s65, 1
    %s67 = scalar_select %p64, %s65, %s66
    %p70 = pneg %p64
    %p71 = scmp.eq.s32.totalorder %s15, 1
    %p72 = por %p70, %p71
    %p73 = scmp.ne.s32.totalorder %s65, %s68
    %p74 = scmp.eq.s32.totalorder %s15, 0
    %p75 = por %p73, %p74
    %p76 = scmp.ne.s32.totalorder %s65, %s68
    %p77 = scmp.eq.s32.totalorder %s20, 1
    %p78 = por %p76, %p77
    %p79 = scmp.ne.s32.totalorder %s68, %s69
    %p80 = scmp.eq.s32.totalorder %s20, 0
    %p81 = por %p79, %p80
    %p82 = scmp.ne.s32.totalorder %s68, %s69
    %p83 = scmp.eq.s32.totalorder %s21, 1
    %p84 = por %p82, %p83
    %p86 = scmp.ne.s32.totalorder %s69, %s85
    %p87 = scmp.eq.s32.totalorder %s21, 0
    %p88 = por %p86, %p87
    %s90 = sadd.s32 %s89, 1
    %p93 = scmp.eq.s32.totalorder %s15, 1
    %p94 = scmp.ne.s32.totalorder %s89, %s91
    %p95 = scmp.eq.s32.totalorder %s15, 0
    %p96 = por %p94, %p95
    %p97 = scmp.ne.s32.totalorder %s89, %s91
    %p98 = scmp.eq.s32.totalorder %s20, 1
    %p99 = por %p97, %p98
    %p100 = scmp.ne.s32.totalorder %s91, %s92
    %p101 = scmp.eq.s32.totalorder %s20, 0
    %p102 = por %p100, %p101
    %p103 = scmp.ne.s32.totalorder %s91, %s92
    %p104 = scmp.eq.s32.totalorder %s21, 1
    %p105 = por %p103, %p104
    %p107 = scmp.ne.s32.totalorder %s92, %s106
    %p108 = scmp.eq.s32.totalorder %s21, 0
    %p109 = por %p107, %p108
    %s111 = sadd.s32 %s110, 1
    %p114 = scmp.eq.s32.totalorder %s15, 1
    %p115 = scmp.ne.s32.totalorder %s110, %s112
    %p116 = scmp.eq.s32.totalorder %s15, 0
    %p117 = por %p115, %p116
    %p118 = scmp.ne.s32.totalorder %s110, %s112
    %p119 = scmp.eq.s32.totalorder %s20, 1
    %p120 = por %p118, %p119
    %p121 = scmp.ne.s32.totalorder %s112, %s113
    %p122 = scmp.eq.s32.totalorder %s20, 0
    %p123 = por %p121, %p122
    %p124 = scmp.ne.s32.totalorder %s112, %s113
    %p125 = scmp.eq.s32.totalorder %s21, 1
    %p126 = por %p124, %p125
    %p128 = scmp.ne.s32.totalorder %s113, %s127
    %p129 = scmp.eq.s32.totalorder %s21, 0
    %p130 = por %p128, %p129
    %s132 = sadd.s32 %s131, 1
    %p135 = scmp.eq.s32.totalorder %s15, 1
    %p136 = scmp.ne.s32.totalorder %s131, %s133
    %p137 = scmp.eq.s32.totalorder %s15, 0
    %p138 = por %p136, %p137
    %p139 = scmp.ne.s32.totalorder %s131, %s133
    %p140 = scmp.eq.s32.totalorder %s20, 1
    %p141 = por %p139, %p140
    %p142 = scmp.ne.s32.totalorder %s133, %s134
    %p143 = scmp.eq.s32.totalorder %s20, 0
    %p144 = por %p142, %p143
    %p145 = scmp.ne.s32.totalorder %s133, %s134
    %p146 = scmp.eq.s32.totalorder %s21, 1
    %p147 = por %p145, %p146
    %p149 = scmp.ne.s32.totalorder %s134, %s148
    %p150 = scmp.eq.s32.totalorder %s21, 0
    %p151 = por %p149, %p150
    %s153 = sadd.s32 %s152, 1
    %p156 = scmp.eq.s32.totalorder %s15, 1
    %p157 = scmp.ne.s32.totalorder %s152, %s154
    %p158 = scmp.eq.s32.totalorder %s15, 0
    %p159 = por %p157, %p158
    %p160 = scmp.ne.s32.totalorder %s152, %s154
    %p161 = scmp.eq.s32.totalorder %s20, 1
    %p162 = por %p160, %p161
    %p163 = scmp.ne.s32.totalorder %s154, %s155
    %p164 = scmp.eq.s32.totalorder %s20, 0
    %p165 = por %p163, %p164
    %p166 = scmp.ne.s32.totalorder %s154, %s155
    %p167 = scmp.eq.s32.totalorder %s21, 1
    %p168 = por %p166, %p167
    %p170 = scmp.ne.s32.totalorder %s155, %s169
    %p171 = scmp.eq.s32.totalorder %s21, 0
    %p172 = por %p170, %p171
    %s174 = sadd.s32 %s173, 1
    %p177 = scmp.eq.s32.totalorder %s15, 1
    %p178 = scmp.ne.s32.totalorder %s173, %s175
    %p179 = scmp.eq.s32.totalorder %s15, 0
    %p180 = por %p178, %p179
    %p181 = scmp.ne.s32.totalorder %s173, %s175
    %p182 = scmp.eq.s32.totalorder %s20, 1
    %p183 = por %p181, %p182
    %p184 = scmp.ne.s32.totalorder %s175, %s176
    %p185 = scmp.eq.s32.totalorder %s20, 0
    %p186 = por %p184, %p185
    %p187 = scmp.ne.s32.totalorder %s175, %s176
    %p188 = scmp.eq.s32.totalorder %s21, 1
    %p189 = por %p187, %p188
    %p191 = scmp.ne.s32.totalorder %s176, %s190
    %p192 = scmp.eq.s32.totalorder %s21, 0
    %p193 = por %p191, %p192
    %s194 = ssub.s32 %s22, %s34
    %p195 = scmp.eq.s32.totalorder %s194, 0
    %s197 = sadd.s32 %s196, 1
    %s198 = scalar_select %p195, %s196, %s197
    %p201 = pneg %p195
    %p202 = scmp.eq.s32.totalorder %s15, 1
    %p203 = por %p201, %p202
    %p204 = scmp.ne.s32.totalorder %s196, %s199
    %p205 = scmp.eq.s32.totalorder %s15, 0
    %p206 = por %p204, %p205
    %p207 = scmp.ne.s32.totalorder %s196, %s199
    %p208 = scmp.eq.s32.totalorder %s20, 1
    %p209 = por %p207, %p208
    %p210 = scmp.ne.s32.totalorder %s199, %s200
    %p211 = scmp.eq.s32.totalorder %s20, 0
    %p212 = por %p210, %p211
    %p213 = scmp.ne.s32.totalorder %s199, %s200
    %p214 = scmp.eq.s32.totalorder %s21, 1
    %p215 = por %p213, %p214
    %p217 = scmp.ne.s32.totalorder %s200, %s216
    %p218 = scmp.eq.s32.totalorder %s21, 0
    %p219 = por %p217, %p218
    %s220 = ssub.s32 %s22, %s34
    %p221 = scmp.eq.s32.totalorder %s220, 0
    %s223 = sadd.s32 %s222, 1
    %s224 = scalar_select %p221, %s222, %s223
    %p227 = pneg %p221
    %p228 = scmp.eq.s32.totalorder %s15, 1
    %p229 = por %p227, %p228
    %p230 = scmp.ne.s32.totalorder %s222, %s225
    %p231 = scmp.eq.s32.totalorder %s15, 0
    %p232 = por %p230, %p231
    %p233 = scmp.ne.s32.totalorder %s222, %s225
    %p234 = scmp.eq.s32.totalorder %s20, 1
    %p235 = por %p233, %p234
    %p236 = scmp.ne.s32.totalorder %s225, %s226
    %p237 = scmp.eq.s32.totalorder %s20, 0
    %p238 = por %p236, %p237
    %p239 = scmp.ne.s32.totalorder %s225, %s226
    %p240 = scmp.eq.s32.totalorder %s21, 1
    %p241 = por %p239, %p240
    %p243 = scmp.ne.s32.totalorder %s226, %s242
    %p244 = scmp.eq.s32.totalorder %s21, 0
    %p245 = por %p243, %p244
    %p246 = scmp.le.s32.totalorder 1, %s15
    %p247 = scmp.lt.s32.totalorder %s15, 3
    %p248 = pnand %p246, %p247
    %p249 = pneg %p248
    // Predicated region
    $region9: #{sa_layer.2} parent=5 // pred_check
      _
    $region10: #{sa_layer.2} parent=5 // pred_check_branch
      %251 = sbr.rel (%p248) target = $region12
    $region11: #{sa_layer.2} parent=5 // pred_region
      %s252 = ssub.s32 %s15, 1
      // Predicated region
      $region13: #{sa_layer.2} parent=11 // pred_check
        %p253 = pneg %p102
      $region14: #{sa_layer.2} parent=11 // pred_check_branch
        %255 = sbr.rel (%p253) target = $region16
      $region15: #{sa_layer.2} parent=11 // pred_region
        _
      $region16: #{sa_layer.2} parent=11 // pred_fallthru
        _
      // Predicated region
      $region17: #{sa_layer.2} parent=11 // pred_check
        %p256 = pneg %p123
      $region18: #{sa_layer.2} parent=11 // pred_check_branch
        %258 = sbr.rel (%p256) target = $region20
      $region19: #{sa_layer.2} parent=11 // pred_region
        _
      $region20: #{sa_layer.2} parent=11 // pred_fallthru
        _
      // Predicated region
      $region21: #{sa_layer.2} parent=11 // pred_check
        %p259 = pneg %p144
      $region22: #{sa_layer.2} parent=11 // pred_check_branch
        %261 = sbr.rel (%p259) target = $region24
      $region23: #{sa_layer.2} parent=11 // pred_region
        _
      $region24: #{sa_layer.2} parent=11 // pred_fallthru
        _
      // Predicated region
      $region25: #{sa_layer.2} parent=11 // pred_check
        %p262 = pneg %p165
      $region26: #{sa_layer.2} parent=11 // pred_check_branch
        %264 = sbr.rel (%p262) target = $region28
      $region27: #{sa_layer.2} parent=11 // pred_region
        _
      $region28: #{sa_layer.2} parent=11 // pred_fallthru
        _
      // Predicated region
      $region29: #{sa_layer.2} parent=11 // pred_check
        %p265 = pneg %p186
      $region30: #{sa_layer.2} parent=11 // pred_check_branch
        %267 = sbr.rel (%p265) target = $region32
      $region31: #{sa_layer.2} parent=11 // pred_region
        _
      $region32: #{sa_layer.2} parent=11 // pred_fallthru
        _
    $region12: #{sa_layer.2} parent=5 // pred_fallthru
      _
    %p268 = scmp.lt.s32.totalorder %s15, 2
    // Predicated region
    $region33: #{sa_layer.2} parent=5 // pred_check
      %p269 = pneg %p268
    $region34: #{sa_layer.2} parent=5 // pred_check_branch
      %271 = sbr.rel (%p269) target = $region36
    $region35: #{sa_layer.2} parent=5 // pred_region
      // Predicated region
      $region37: #{sa_layer.2} parent=35 // pred_check
        %p272 = pneg %p49
      $region38: #{sa_layer.2} parent=35 // pred_check_branch
        %274 = sbr.rel (%p272) target = $region40
      $region39: #{sa_layer.2} parent=35 // pred_region
        %p275 = scmp.lt.s32.totalorder %s22, 1
        %s276 = scalar_select %p275, %s22, 1
        %p277 = scmp.lt.s32.totalorder %s23, 0
        %s278 = scalar_select %p277, %s23, 0
        %s279 = smul.addr %s276, 4
        %s280 = sadd.s32 %s278, %s279
        %s281 = smul.addr %s280, 8
        %s282 = scalar_lea.vmem %s0, %s281
      $region40: #{sa_layer.2} parent=35 // pred_fallthru
        _
      // Predicated region
      $region41: #{sa_layer.2} parent=35 // pred_check
        %p283 = pneg %p75
      $region42: #{sa_layer.2} parent=35 // pred_check_branch
        %285 = sbr.rel (%p283) target = $region44
      $region43: #{sa_layer.2} parent=35 // pred_region
        %p286 = scmp.lt.s32.totalorder %s22, 1
        %s287 = scalar_select %p286, %s22, 1
        %s288 = smul.addr %s287, 4
        %s289 = smul.addr %s288, 8
        %s290 = scalar_lea.vmem %s1, %s289
      $region44: #{sa_layer.2} parent=35 // pred_fallthru
        _
    $region36: #{sa_layer.2} parent=5 // pred_fallthru
      _
    %p291 = scmp.le.s32.totalorder 1, %s15
    %p292 = scmp.lt.s32.totalorder %s15, 3
    %p293 = pnand %p291, %p292
    %p294 = pneg %p293
    // Predicated region
    $region45: #{sa_layer.2} parent=5 // pred_check
      _
    $region46: #{sa_layer.2} parent=5 // pred_check_branch
      %296 = sbr.rel (%p293) target = $region48
    $region47: #{sa_layer.2} parent=5 // pred_region
      %s297 = ssub.s32 %s15, 1
      %p298 = scmp.lt.s32.totalorder %s24, 1
      %s299 = scalar_select %p298, %s24, 1
      %p300 = scmp.lt.s32.totalorder %s25, 0
      %s301 = scalar_select %p300, %s25, 0
      %s302 = smul.addr %s299, 4
      %s303 = sadd.s32 %s301, %s302
      %s304 = smul.addr %s303, 8
      %s305 = scalar_lea.vmem %s0, %s304
      %p306 = pneg %p55
      %p307 = pneg %p52
      %p308 = scmp.lt.s32.totalorder %s24, 1
      %s309 = scalar_select %p308, %s24, 1
      %s310 = smul.addr %s309, 4
      %s311 = smul.addr %s310, 8
      %s312 = scalar_lea.vmem %s1, %s311
      %p313 = pneg %p81
      %p314 = pneg %p78
      %p315 = pneg %p102
      %p316 = pneg %p99
      %p317 = pneg %p123
      %p318 = pneg %p120
      %p319 = pneg %p144
      %p320 = pneg %p141
      %p321 = pneg %p165
      %p322 = pneg %p162
      %p323 = pneg %p186
      %p324 = pneg %p183
      %p325 = pneg %p212
      %p326 = pneg %p209
      %p327 = scmp.lt.s32.totalorder %s24, 1
      %s328 = scalar_select %p327, %s24, 1
      %s329 = smul.addr %s328, 4
      %s330 = smul.addr %s329, 8
      %s331 = scalar_lea.vmem %s7, %s330
      %p332 = pneg %p238
      %p333 = pneg %p235
      %p334 = scmp.lt.s32.totalorder %s24, 1
      %s335 = scalar_select %p334, %s24, 1
      %s336 = smul.addr %s335, 4
      %s337 = smul.addr %s336, 8
      %s338 = scalar_lea.vmem %s8, %s337
      %p339 = scmp.lt.s32.totalorder %s24, 1
      %s340 = scalar_select %p339, %s24, 1
      %p341 = scmp.lt.s32.totalorder %s25, 0
      %s342 = scalar_select %p341, %s25, 0
      %s343 = smul.addr %s340, 4
      %s344 = sadd.s32 %s342, %s343
      %s345 = smul.addr %s344, 8
      %s346 = scalar_lea.vmem %s0, %s345
      %p347 = scmp.lt.s32.totalorder %s24, 1
      %s348 = scalar_select %p347, %s24, 1
      %s349 = smul.addr %s348, 4
      %s350 = smul.addr %s349, 8
      %s351 = scalar_lea.vmem %s1, %s350
      %p352 = scmp.lt.s32.totalorder %s24, 1
      %s353 = scalar_select %p352, %s24, 1
      %s354 = smul.addr %s353, 4
      %s355 = smul.addr %s354, 8
      %s356 = scalar_lea.vmem %s7, %s355
      %p357 = scmp.lt.s32.totalorder %s24, 1
      %s358 = scalar_select %p357, %s24, 1
      %s359 = smul.addr %s358, 4
      %s360 = smul.addr %s359, 8
      %s361 = scalar_lea.vmem %s8, %s360
      %p362 = scmp.eq.s32.totalorder %s25, 0
      // Predicated region
      $region49: #{sa_layer.2} parent=47 // pred_check
        %p363 = pneg %p362
      $region50: #{sa_layer.2} parent=47 // pred_check_branch
        %365 = sbr.rel (%p363) target = $region52
      $region51: #{sa_layer.2} parent=47 // pred_region
        %vm366 = vcmask 130048
        %367 = vst.msk [vmem:[#allocation2] sm:$0xff] %vm366, 0.0
        %368 = vst.msk [vmem:[#allocation2 + $0x8] sm:$0xff] %vm366, 0.0
        %369 = vst.msk [vmem:[#allocation2 + $0x10] sm:$0xff] %vm366, 0.0
        %370 = vst.msk [vmem:[#allocation2 + $0x18] sm:$0xff] %vm366, 0.0
        %vm371 = vcmask 122880
        %372 = vst.msk [vmem:[#allocation2 + $0x20] sm:$0x1] %vm371, 0.0
      $region52: #{sa_layer.2} parent=47 // pred_fallthru
        _
      %v373 = vld [vmem:[%s346] sm:$0xff]
      %v374 = vld [vmem:[%s346 + $0x8] sm:$0xff]
      %v375 = vld [vmem:[%s346 + $0x10] sm:$0xff]
      %v376 = vld [vmem:[%s346 + $0x18] sm:$0xff]
      %v377 = vld [vmem:[%s351] sm:$0xff]
      %v378 = vld [vmem:[%s351 + $0x8] sm:$0xff]
      %v379 = vld [vmem:[%s351 + $0x10] sm:$0xff]
      %v380 = vld [vmem:[%s351 + $0x18] sm:$0xff]
      %v381 = vld [vmem:[%s2] sm:$0xff]
      %v382 = vld [vmem:[%s2 + $0x8] sm:$0xff]
      %v383 = vld [vmem:[%s2 + $0x10] sm:$0xff]
      %v384 = vld [vmem:[%s2 + $0x18] sm:$0xff]
      %385 = vxpose.xlu0.b32.start [1/16] %v373, 128
      %386 = vxpose.xlu0.b32.cont [2/16] %v374, 128
      %387 = vxpose.xlu0.b32.cont [3/16] %v375, 128
      %388 = vxpose.xlu0.b32.cont [4/16] %v376, 128
      %389 = vxpose.xlu0.b32.cont [5/16] 0.0, 128
      %390 = vxpose.xlu0.b32.cont [6/16] 0.0, 128
      %391 = vxpose.xlu0.b32.cont [7/16] 0.0, 128
      %392 = vxpose.xlu0.b32.cont [8/16] 0.0, 128
      %393 = vxpose.xlu0.b32.cont [9/16] 0.0, 128
      %394 = vxpose.xlu0.b32.cont [10/16] 0.0, 128
      %395 = vxpose.xlu0.b32.cont [11/16] 0.0, 128
      %396 = vxpose.xlu0.b32.cont [12/16] 0.0, 128
      %397 = vxpose.xlu0.b32.cont [13/16] 0.0, 128
      %398 = vxpose.xlu0.b32.cont [14/16] 0.0, 128
      %399 = vxpose.xlu0.b32.cont [15/16] 0.0, 128
      %400 = vxpose.xlu0.b32.end [16/16] 0.0, 128
      %v401 = vpop.trf.xlu0
      %v402 = vpop.trf.xlu0
      %v403 = vpop.trf.xlu0
      %v404 = vpop.trf.xlu0
      %v405 = vpop.trf.xlu0
      %v406 = vpop.trf.xlu0
      %v407 = vpop.trf.xlu0
      %v408 = vpop.trf.xlu0
      %v409 = vpop.trf.xlu0
      %v410 = vpop.trf.xlu0
      %v411 = vpop.trf.xlu0
      %v412 = vpop.trf.xlu0
      %v413 = vpop.trf.xlu0
      %v414 = vpop.trf.xlu0
      %v415 = vpop.trf.xlu0
      %v416 = vpop.trf.xlu0
      %vm417 = vcmask 261120
      %v419 = vsel %vm417, %v401, 0
      %v422 = vsel %vm417, %v402, 0
      %424 = vmatprep.subr.mxu0 0.0
      %425 = vmatpush1.msra.mxu0 %v381
      %426 = vmatprep.subr.mxu0 0.0
      %427 = vmatpush1.msra.mxu0 %v382
      %428 = vmatprep.subr.mxu0 0.0
      %429 = vmatpush1.msra.mxu0 %v383
      %430 = vmatprep.subr.mxu0 0.0
      %431 = vmatpush1.msra.mxu0 %v384
      %432 = vmatprep.subr.mxu0 0.0
      %433 = vmatpush1.msra.mxu0 0.0
      %434 = vmatprep.subr.mxu0 0.0
      %435 = vmatpush1.msra.mxu0 0.0
      %436 = vmatprep.subr.mxu0 0.0
      %437 = vmatpush1.msra.mxu0 0.0
      %438 = vmatprep.subr.mxu0 0.0
      %439 = vmatpush1.msra.mxu0 0.0
      %440 = vmatprep.subr.mxu0 0.0
      %441 = vmatpush1.msra.mxu0 0.0
      %442 = vmatprep.subr.mxu0 0.0
      %443 = vmatpush1.msra.mxu0 0.0
      %444 = vmatprep.subr.mxu0 0.0
      %445 = vmatpush1.msra.mxu0 0.0
      %446 = vmatprep.subr.mxu0 0.0
      %447 = vmatpush1.msra.mxu0 0.0
      %448 = vmatprep.subr.mxu0 0.0
      %449 = vmatpush1.msra.mxu0 0.0
      %450 = vmatprep.subr.mxu0 0.0
      %451 = vmatpush1.msra.mxu0 0.0
      %452 = vmatprep.subr.mxu0 0.0
      %453 = vmatpush1.msra.mxu0 0.0
      %454 = vmatprep.subr.mxu0 0.0
      %455 = vmatpush1.msra.mxu0 0.0
      %456 = vmatprep.subr.mxu0 0.0
      %457 = vmatpush1.msra.mxu0 0.0
      %458 = vmatprep.subr.mxu0 0.0
      %459 = vmatpush1.msra.mxu0 0.0
      %460 = vmatprep.subr.mxu0 0.0
      %461 = vmatpush1.msra.mxu0 0.0
      %462 = vmatprep.subr.mxu0 0.0
      %463 = vmatpush1.msra.mxu0 0.0
      %464 = vmatprep.subr.mxu0 0.0
      %465 = vmatpush1.msra.mxu0 0.0
      %466 = vmatprep.subr.mxu0 0.0
      %467 = vmatpush1.msra.mxu0 0.0
      %468 = vmatprep.subr.mxu0 0.0
      %469 = vmatpush1.msra.mxu0 0.0
      %470 = vmatprep.subr.mxu0 0.0
      %471 = vmatpush1.msra.mxu0 0.0
      %472 = vmatprep.subr.mxu0 0.0
      %473 = vmatpush1.msra.mxu0 0.0
      %474 = vmatprep.subr.mxu0 0.0
      %475 = vmatpush1.msra.mxu0 0.0
      %476 = vmatprep.subr.mxu0 0.0
      %477 = vmatpush1.msra.mxu0 0.0
      %478 = vmatprep.subr.mxu0 0.0
      %479 = vmatpush1.msra.mxu0 0.0
      %480 = vmatprep.subr.mxu0 0.0
      %481 = vmatpush1.msra.mxu0 0.0
      %482 = vmatprep.subr.mxu0 0.0
      %483 = vmatpush1.msra.mxu0 0.0
      %484 = vmatprep.subr.mxu0 0.0
      %485 = vmatpush1.msra.mxu0 0.0
      %486 = vmatprep.subr.mxu0 0.0
      %487 = vmatpush1.msra.mxu0 0.0
      %488 = vmatprep.mubr.f32.mxu0 0.0
      %489 = vmatmul.mubr.f32.gmra.mrb[0].mxu0 %v419
      %v490 = vpop.f32.mrb[0].mxu0
      %v491 = vadd.f32 0.0, %v490
      %v492 = vpop.f32.mrb[0].mxu0
      %493 = vmatprep.mubr.f32.mxu0 0.0
      %494 = vmatmul.mubr.f32.gmra.mrb[0].mxu0 %v422
      %v495 = vpop.f32.mrb[0].mxu0
      %v496 = vadd.f32 0.0, %v495
      %v497 = vpop.f32.mrb[0].mxu0
      %498 = vdwg.mxu0
      %v500 = vsel %vm417, %v491, 0
      %v503 = vsel %vm417, %v496, 0
      %505 = vmatprep.subr.mxu0 0.0
      %506 = vmatpush1.msra.mxu0 %v377
      %507 = vmatprep.subr.mxu0 0.0
      %508 = vmatpush1.msra.mxu0 %v378
      %509 = vmatprep.subr.mxu0 0.0
      %510 = vmatpush1.msra.mxu0 %v379
      %511 = vmatprep.subr.mxu0 0.0
      %512 = vmatpush1.msra.mxu0 %v380
      %513 = vmatprep.subr.mxu0 0.0
      %514 = vmatpush1.msra.mxu0 0.0
      %515 = vmatprep.subr.mxu0 0.0
      %516 = vmatpush1.msra.mxu0 0.0
      %517 = vmatprep.subr.mxu0 0.0
      %518 = vmatpush1.msra.mxu0 0.0
      %519 = vmatprep.subr.mxu0 0.0
      %520 = vmatpush1.msra.mxu0 0.0
      %521 = vmatprep.subr.mxu0 0.0
      %522 = vmatpush1.msra.mxu0 0.0
      %523 = vmatprep.subr.mxu0 0.0
      %524 = vmatpush1.msra.mxu0 0.0
      %525 = vmatprep.subr.mxu0 0.0
      %526 = vmatpush1.msra.mxu0 0.0
      %527 = vmatprep.subr.mxu0 0.0
      %528 = vmatpush1.msra.mxu0 0.0
      %529 = vmatprep.subr.mxu0 0.0
      %530 = vmatpush1.msra.mxu0 0.0
      %531 = vmatprep.subr.mxu0 0.0
      %532 = vmatpush1.msra.mxu0 0.0
      %533 = vmatprep.subr.mxu0 0.0
      %534 = vmatpush1.msra.mxu0 0.0
      %535 = vmatprep.subr.mxu0 0.0
      %536 = vmatpush1.msra.mxu0 0.0
      %537 = vmatprep.subr.mxu0 0.0
      %538 = vmatpush1.msra.mxu0 0.0
      %539 = vmatprep.subr.mxu0 0.0
      %540 = vmatpush1.msra.mxu0 0.0
      %541 = vmatprep.subr.mxu0 0.0
      %542 = vmatpush1.msra.mxu0 0.0
      %543 = vmatprep.subr.mxu0 0.0
      %544 = vmatpush1.msra.mxu0 0.0
      %545 = vmatprep.subr.mxu0 0.0
      %546 = vmatpush1.msra.mxu0 0.0
      %547 = vmatprep.subr.mxu0 0.0
      %548 = vmatpush1.msra.mxu0 0.0
      %549 = vmatprep.subr.mxu0 0.0
      %550 = vmatpush1.msra.mxu0 0.0
      %551 = vmatprep.subr.mxu0 0.0
      %552 = vmatpush1.msra.mxu0 0.0
      %553 = vmatprep.subr.mxu0 0.0
      %554 = vmatpush1.msra.mxu0 0.0
      %555 = vmatprep.subr.mxu0 0.0
      %556 = vmatpush1.msra.mxu0 0.0
      %557 = vmatprep.subr.mxu0 0.0
      %558 = vmatpush1.msra.mxu0 0.0
      %559 = vmatprep.subr.mxu0 0.0
      %560 = vmatpush1.msra.mxu0 0.0
      %561 = vmatprep.subr.mxu0 0.0
      %562 = vmatpush1.msra.mxu0 0.0
      %563 = vmatprep.subr.mxu0 0.0
      %564 = vmatpush1.msra.mxu0 0.0
      %565 = vmatprep.subr.mxu0 0.0
      %566 = vmatpush1.msra.mxu0 0.0
      %567 = vmatprep.subr.mxu0 0.0
      %568 = vmatpush1.msra.mxu0 0.0
      %569 = vmatprep.mubr.f32.mxu0 0.0
      %570 = vmatmul.mubr.f32.gmra.mrb[0].mxu0 %v500
      %v571 = vpop.f32.mrb[0].mxu0
      %v572 = vadd.f32 0.0, %v571
      %v573 = vpop.f32.mrb[0].mxu0
      %574 = vmatprep.mubr.f32.mxu0 0.0
      %575 = vmatmul.mubr.f32.gmra.mrb[0].mxu0 %v503
      %v576 = vpop.f32.mrb[0].mxu0
      %v577 = vadd.f32 0.0, %v576
      %v578 = vpop.f32.mrb[0].mxu0
      %579 = vdwg.mxu0
      %vm580 = vcmask 130048
      %v581 = vsel %vm580, %v572, -inf
      %582 = vmax.xlane.f32.xlu0 %v581
      %v583 = vpop.xlane.xlu0 %582
      %v584 = vsel %vm580, %v577, -inf
      %585 = vmax.xlane.f32.xlu0 %v584
      %v586 = vpop.xlane.xlu0 %585
      %v587 = vsub.f32 %v572, %v583
      %v588 = vsub.f32 %v577, %v586
      %v589 = vmul.f32 %v587, 1.442695
      %v590 = vpow.pop %v589
      %v591 = vmul.f32 %v588, 1.442695
      %v592 = vpow.pop %v591
      %v593 = vsel %vm580, %v590, 0.0
      %594 = vadd.xlane.f32.xlu0 %v593
      %v595 = vpop.xlane.xlu0 %594
      %v596 = vsel %vm580, %v592, 0.0
      %597 = vadd.xlane.f32.xlu0 %v596
      %v598 = vpop.xlane.xlu0 %597
      %v599 = vrcp.pop %v595
      %v600 = vmul.f32 1.0, %v599
      %v601 = vrcp.pop %v598
      %v602 = vmul.f32 1.0, %v601
      %v603 = vmul.f32 %v590, %v600
      %v604 = vmul.f32 %v592, %v602
      %v605 = vld [vmem:[%s3] sm:$0xff]
      %v606 = vld [vmem:[%s3 + $0x8] sm:$0xff]
      %v607 = vld [vmem:[%s3 + $0x10] sm:$0xff]
      %v608 = vld [vmem:[%s3 + $0x18] sm:$0xff]
      %v609 = vld [vmem:[%s3 + $0x20] sm:$0x1]
      %v610 = vld [vmem:[%s4] sm:$0xff]
      %v611 = vld [vmem:[%s4 + $0x8] sm:$0xff]
      %v612 = vld [vmem:[%s4 + $0x10] sm:$0xff]
      %v613 = vld [vmem:[%s4 + $0x18] sm:$0xff]
      %v614 = vld [vmem:[%s4 + $0x20] sm:$0x1]
      %616 = vset.pattern.permute.xlu0 0
      %617 = vperm.xlu0 %616, %v610
      %v618 = vpop.permute.xlu0 %617
      %621 = vset.pattern.permute.xlu0 0
      %622 = vperm.xlu0 %621, %v611
      %v623 = vpop.permute.xlu0 %622
      %626 = vset.pattern.permute.xlu0 0
      %627 = vperm.xlu0 %626, %v612
      %v628 = vpop.permute.xlu0 %627
      %631 = vset.pattern.permute.xlu0 0
      %632 = vperm.xlu0 %631, %v613
      %v633 = vpop.permute.xlu0 %632
      %636 = vset.pattern.permute.xlu0 0
      %637 = vperm.xlu0 %636, %v614
      %v638 = vpop.permute.xlu0 %637
      %v641 = vsel %vm417, %v605, 0
      %v644 = vsel %vm417, %v606, 0
      %v647 = vsel %vm417, %v607, 0
      %v650 = vsel %vm417, %v608, 0
      %v653 = vsel %vm417, %v609, 0
      %655 = vmatprep.subr.mxu0 0.0
      %656 = vmatpush1.msra.mxu0 %v373
      %657 = vmatprep.subr.mxu0 0.0
      %658 = vmatpush1.msra.mxu0 %v374
      %659 = vmatprep.subr.mxu0 0.0
      %660 = vmatpush1.msra.mxu0 %v375
      %661 = vmatprep.subr.mxu0 0.0
      %662 = vmatpush1.msra.mxu0 %v376
      %663 = vmatprep.subr.mxu0 0.0
      %664 = vmatpush1.msra.mxu0 0.0
      %665 = vmatprep.subr.mxu0 0.0
      %666 = vmatpush1.msra.mxu0 0.0
      %667 = vmatprep.subr.mxu0 0.0
      %668 = vmatpush1.msra.mxu0 0.0
      %669 = vmatprep.subr.mxu0 0.0
      %670 = vmatpush1.msra.mxu0 0.0
      %671 = vmatprep.subr.mxu0 0.0
      %672 = vmatpush1.msra.mxu0 0.0
      %673 = vmatprep.subr.mxu0 0.0
      %674 = vmatpush1.msra.mxu0 0.0
      %675 = vmatprep.subr.mxu0 0.0
      %676 = vmatpush1.msra.mxu0 0.0
      %677 = vmatprep.subr.mxu0 0.0
      %678 = vmatpush1.msra.mxu0 0.0
      %679 = vmatprep.subr.mxu0 0.0
      %680 = vmatpush1.msra.mxu0 0.0
      %681 = vmatprep.subr.mxu0 0.0
      %682 = vmatpush1.msra.mxu0 0.0
      %683 = vmatprep.subr.mxu0 0.0
      %684 = vmatpush1.msra.mxu0 0.0
      %685 = vmatprep.subr.mxu0 0.0
      %686 = vmatpush1.msra.mxu0 0.0
      %687 = vmatprep.subr.mxu0 0.0
      %688 = vmatpush1.msra.mxu0 0.0
      %689 = vmatprep.subr.mxu0 0.0
      %690 = vmatpush1.msra.mxu0 0.0
      %691 = vmatprep.subr.mxu0 0.0
      %692 = vmatpush1.msra.mxu0 0.0
      %693 = vmatprep.subr.mxu0 0.0
      %694 = vmatpush1.msra.mxu0 0.0
      %695 = vmatprep.subr.mxu0 0.0
      %696 = vmatpush1.msra.mxu0 0.0
      %697 = vmatprep.subr.mxu0 0.0
      %698 = vmatpush1.msra.mxu0 0.0
      %699 = vmatprep.subr.mxu0 0.0
      %700 = vmatpush1.msra.mxu0 0.0
      %701 = vmatprep.subr.mxu0 0.0
      %702 = vmatpush1.msra.mxu0 0.0
      %703 = vmatprep.subr.mxu0 0.0
      %704 = vmatpush1.msra.mxu0 0.0
      %705 = vmatprep.subr.mxu0 0.0
      %706 = vmatpush1.msra.mxu0 0.0
      %707 = vmatprep.subr.mxu0 0.0
      %708 = vmatpush1.msra.mxu0 0.0
      %709 = vmatprep.subr.mxu0 0.0
      %710 = vmatpush1.msra.mxu0 0.0
      %711 = vmatprep.subr.mxu0 0.0
      %712 = vmatpush1.msra.mxu0 0.0
      %713 = vmatprep.subr.mxu0 0.0
      %714 = vmatpush1.msra.mxu0 0.0
      %715 = vmatprep.subr.mxu0 0.0
      %716 = vmatpush1.msra.mxu0 0.0
      %717 = vmatprep.subr.mxu0 0.0
      %718 = vmatpush1.msra.mxu0 0.0
      %719 = vmatprep.mubr.f32.mxu0 0.0
      %720 = vmatmul.mubr.f32.gmra.mrb[0].mxu0 %v641
      %v721 = vpop.f32.mrb[0].mxu0
      %v722 = vadd.f32 %v618, %v721
      %v723 = vpop.f32.mrb[0].mxu0
      %724 = vmatprep.mubr.f32.mxu0 0.0
      %725 = vmatmul.mubr.f32.gmra.mrb[0].mxu0 %v644
      %v726 = vpop.f32.mrb[0].mxu0
      %v727 = vadd.f32 %v623, %v726
      %v728 = vpop.f32.mrb[0].mxu0
      %729 = vmatprep.mubr.f32.mxu0 0.0
      %730 = vmatmul.mubr.f32.gmra.mrb[0].mxu0 %v647
      %v731 = vpop.f32.mrb[0].mxu0
      %v732 = vadd.f32 %v628, %v731
      %v733 = vpop.f32.mrb[0].mxu0
      %734 = vmatprep.mubr.f32.mxu0 0.0
      %735 = vmatmul.mubr.f32.gmra.mrb[0].mxu0 %v650
      %v736 = vpop.f32.mrb[0].mxu0
      %v737 = vadd.f32 %v633, %v736
      %v738 = vpop.f32.mrb[0].mxu0
      %739 = vmatprep.mubr.f32.mxu0 0.0
      %740 = vmatmul.mubr.f32.gmra.mrb[0].mxu0 %v653
      %v741 = vpop.f32.mrb[0].mxu0
      %v742 = vadd.f32 %v638, %v741
      %v743 = vpop.f32.mrb[0].mxu0
      %744 = vdwg.mxu0
      %v745 = vld [vmem:[#allocation2] sm:$0xff]
      %v746 = vld [vmem:[#allocation2 + $0x8] sm:$0xff]
      %v747 = vld [vmem:[#allocation2 + $0x10] sm:$0xff]
      %v748 = vld [vmem:[#allocation2 + $0x18] sm:$0xff]
      %v749 = vld [vmem:[#allocation2 + $0x20] sm:$0x1]
      %v751 = vsel %vm580, %v722, 0
      %v754 = vsel %vm580, %v727, 0
      %v757 = vsel %vm580, %v732, 0
      %v760 = vsel %vm580, %v737, 0
      %v763 = vsel %vm580, %v742, 0
      %765 = vmatprep.subr.mxu0 0.0
      %766 = vmatpush1.msra.mxu0 %v603
      %767 = vmatprep.subr.mxu0 0.0
      %768 = vmatpush1.msra.mxu0 %v604
      %769 = vmatprep.subr.mxu0 0.0
      %770 = vmatpush1.msra.mxu0 0.0
      %771 = vmatprep.subr.mxu0 0.0
      %772 = vmatpush1.msra.mxu0 0.0
      %773 = vmatprep.subr.mxu0 0.0
      %774 = vmatpush1.msra.mxu0 0.0
      %775 = vmatprep.subr.mxu0 0.0
      %776 = vmatpush1.msra.mxu0 0.0
      %777 = vmatprep.subr.mxu0 0.0
      %778 = vmatpush1.msra.mxu0 0.0
      %779 = vmatprep.subr.mxu0 0.0
      %780 = vmatpush1.msra.mxu0 0.0
      %781 = vmatprep.subr.mxu0 0.0
      %782 = vmatpush1.msra.mxu0 0.0
      %783 = vmatprep.subr.mxu0 0.0
      %784 = vmatpush1.msra.mxu0 0.0
      %785 = vmatprep.subr.mxu0 0.0
      %786 = vmatpush1.msra.mxu0 0.0
      %787 = vmatprep.subr.mxu0 0.0
      %788 = vmatpush1.msra.mxu0 0.0
      %789 = vmatprep.subr.mxu0 0.0
      %790 = vmatpush1.msra.mxu0 0.0
      %791 = vmatprep.subr.mxu0 0.0
      %792 = vmatpush1.msra.mxu0 0.0
      %793 = vmatprep.subr.mxu0 0.0
      %794 = vmatpush1.msra.mxu0 0.0
      %795 = vmatprep.subr.mxu0 0.0
      %796 = vmatpush1.msra.mxu0 0.0
      %797 = vmatprep.subr.mxu0 0.0
      %798 = vmatpush1.msra.mxu0 0.0
      %799 = vmatprep.subr.mxu0 0.0
      %800 = vmatpush1.msra.mxu0 0.0
      %801 = vmatprep.subr.mxu0 0.0
      %802 = vmatpush1.msra.mxu0 0.0
      %803 = vmatprep.subr.mxu0 0.0
      %804 = vmatpush1.msra.mxu0 0.0
      %805 = vmatprep.subr.mxu0 0.0
      %806 = vmatpush1.msra.mxu0 0.0
      %807 = vmatprep.subr.mxu0 0.0
      %808 = vmatpush1.msra.mxu0 0.0
      %809 = vmatprep.subr.mxu0 0.0
      %810 = vmatpush1.msra.mxu0 0.0
      %811 = vmatprep.subr.mxu0 0.0
      %812 = vmatpush1.msra.mxu0 0.0
      %813 = vmatprep.subr.mxu0 0.0
      %814 = vmatpush1.msra.mxu0 0.0
      %815 = vmatprep.subr.mxu0 0.0
      %816 = vmatpush1.msra.mxu0 0.0
      %817 = vmatprep.subr.mxu0 0.0
      %818 = vmatpush1.msra.mxu0 0.0
      %819 = vmatprep.subr.mxu0 0.0
      %820 = vmatpush1.msra.mxu0 0.0
      %821 = vmatprep.subr.mxu0 0.0
      %822 = vmatpush1.msra.mxu0 0.0
      %823 = vmatprep.subr.mxu0 0.0
      %824 = vmatpush1.msra.mxu0 0.0
      %825 = vmatprep.subr.mxu0 0.0
      %826 = vmatpush1.msra.mxu0 0.0
      %827 = vmatprep.subr.mxu0 0.0
      %828 = vmatpush1.msra.mxu0 0.0
      %829 = vmatprep.mubr.f32.mxu0 0.0
      %830 = vmatmul.mubr.f32.gmra.mrb[0].mxu0 %v751
      %v831 = vpop.f32.mrb[0].mxu0
      %v832 = vadd.f32 0.0, %v831
      %v833 = vpop.f32.mrb[0].mxu0
      %834 = vmatprep.mubr.f32.mxu0 0.0
      %835 = vmatmul.mubr.f32.gmra.mrb[0].mxu0 %v754
      %v836 = vpop.f32.mrb[0].mxu0
      %v837 = vadd.f32 0.0, %v836
      %v838 = vpop.f32.mrb[0].mxu0
      %839 = vmatprep.mubr.f32.mxu0 0.0
      %840 = vmatmul.mubr.f32.gmra.mrb[0].mxu0 %v757
      %v841 = vpop.f32.mrb[0].mxu0
      %v842 = vadd.f32 0.0, %v841
      %v843 = vpop.f32.mrb[0].mxu0
      %844 = vmatprep.mubr.f32.mxu0 0.0
      %845 = vmatmul.mubr.f32.gmra.mrb[0].mxu0 %v760
      %v846 = vpop.f32.mrb[0].mxu0
      %v847 = vadd.f32 0.0, %v846
      %v848 = vpop.f32.mrb[0].mxu0
      %849 = vmatprep.mubr.f32.mxu0 0.0
      %850 = vmatmul.mubr.f32.gmra.mrb[0].mxu0 %v763
      %v851 = vpop.f32.mrb[0].mxu0
      %v852 = vadd.f32 0.0, %v851
      %v853 = vpop.f32.mrb[0].mxu0
      %854 = vdwg.mxu0
      %v855 = vadd.f32 %v745, %v832
      %v856 = vadd.f32 %v746, %v837
      %v857 = vadd.f32 %v747, %v842
      %v858 = vadd.f32 %v748, %v847
      %v859 = vadd.f32 %v749, %v852
      %860 = vst.msk [vmem:[#allocation2] sm:$0xff] %vm580, %v855
      %861 = vst.msk [vmem:[#allocation2 + $0x8] sm:$0xff] %vm580, %v856
      %862 = vst.msk [vmem:[#allocation2 + $0x10] sm:$0xff] %vm580, %v857
      %863 = vst.msk [vmem:[#allocation2 + $0x18] sm:$0xff] %vm580, %v858
      %vm864 = vcmask 122880
      %865 = vst.msk [vmem:[#allocation2 + $0x20] sm:$0x1] %vm864, %v859
      // Predicated region
      $region53: #{sa_layer.2} parent=47 // pred_check
        %p866 = pneg %p362
      $region54: #{sa_layer.2} parent=47 // pred_check_branch
        %868 = sbr.rel (%p866) target = $region56
      $region55: #{sa_layer.2} parent=47 // pred_region
        %v869 = vld [vmem:[#allocation2] sm:$0xff]
        %v870 = vld [vmem:[#allocation2 + $0x8] sm:$0xff]
        %v871 = vld [vmem:[#allocation2 + $0x10] sm:$0xff]
        %v872 = vld [vmem:[#allocation2 + $0x18] sm:$0xff]
        %v873 = vld [vmem:[#allocation2 + $0x20] sm:$0x1]
        %v874 = vadd.f32 %v873, 1e-09
        %v875 = vrcp.pop %v874
        %v876 = vmul.f32 1.0, %v875
        %v877 = vlaneseq
        %v878 = vshrl.u32 %v877, 7
        %v879 = vsub.s32 0, %v878
        %v880 = vrot.slane %v876, %v879
        %v881 = vmul.f32 %v869, %v880
        %v882 = vmul.f32 %v870, %v880
        %v883 = vmul.f32 %v871, %v880
        %v884 = vmul.f32 %v872, %v880
        %v885 = vsub.f32 %v377, %v881
        %v886 = vsub.f32 %v378, %v882
        %v887 = vsub.f32 %v379, %v883
        %v888 = vsub.f32 %v380, %v884
        %v889 = vld [vmem:[%s5] sm:$0xff]
        %v890 = vld [vmem:[%s5 + $0x8] sm:$0xff]
        %v891 = vld [vmem:[%s5 + $0x10] sm:$0xff]
        %v892 = vld [vmem:[%s5 + $0x18] sm:$0xff]
        %v893 = vld [vmem:[%s6] sm:$0xff]
        %v894 = vld [vmem:[%s6 + $0x8] sm:$0xff]
        %v895 = vld [vmem:[%s6 + $0x10] sm:$0xff]
        %v896 = vld [vmem:[%s6 + $0x18] sm:$0xff]
        %898 = vset.pattern.permute.xlu0 0
        %899 = vperm.xlu0 %898, %v893
        %v900 = vpop.permute.xlu0 %899
        %903 = vset.pattern.permute.xlu0 0
        %904 = vperm.xlu0 %903, %v894
        %v905 = vpop.permute.xlu0 %904
        %908 = vset.pattern.permute.xlu0 0
        %909 = vperm.xlu0 %908, %v895
        %v910 = vpop.permute.xlu0 %909
        %913 = vset.pattern.permute.xlu0 0
        %914 = vperm.xlu0 %913, %v896
        %v915 = vpop.permute.xlu0 %914
        %v918 = vsel %vm417, %v889, 0
        %v921 = vsel %vm417, %v890, 0
        %v924 = vsel %vm417, %v891, 0
        %v927 = vsel %vm417, %v892, 0
        %929 = vmatprep.subr.mxu0 0.0
        %930 = vmatpush1.msra.mxu0 %v885
        %931 = vmatprep.subr.mxu0 0.0
        %932 = vmatpush1.msra.mxu0 %v886
        %933 = vmatprep.subr.mxu0 0.0
        %934 = vmatpush1.msra.mxu0 %v887
        %935 = vmatprep.subr.mxu0 0.0
        %936 = vmatpush1.msra.mxu0 %v888
        %937 = vmatprep.subr.mxu0 0.0
        %938 = vmatpush1.msra.mxu0 0.0
        %939 = vmatprep.subr.mxu0 0.0
        %940 = vmatpush1.msra.mxu0 0.0
        %941 = vmatprep.subr.mxu0 0.0
        %942 = vmatpush1.msra.mxu0 0.0
        %943 = vmatprep.subr.mxu0 0.0
        %944 = vmatpush1.msra.mxu0 0.0
        %945 = vmatprep.subr.mxu0 0.0
        %946 = vmatpush1.msra.mxu0 0.0
        %947 = vmatprep.subr.mxu0 0.0
        %948 = vmatpush1.msra.mxu0 0.0
        %949 = vmatprep.subr.mxu0 0.0
        %950 = vmatpush1.msra.mxu0 0.0
        %951 = vmatprep.subr.mxu0 0.0
        %952 = vmatpush1.msra.mxu0 0.0
        %953 = vmatprep.subr.mxu0 0.0
        %954 = vmatpush1.msra.mxu0 0.0
        %955 = vmatprep.subr.mxu0 0.0
        %956 = vmatpush1.msra.mxu0 0.0
        %957 = vmatprep.subr.mxu0 0.0
        %958 = vmatpush1.msra.mxu0 0.0
        %959 = vmatprep.subr.mxu0 0.0
        %960 = vmatpush1.msra.mxu0 0.0
        %961 = vmatprep.subr.mxu0 0.0
        %962 = vmatpush1.msra.mxu0 0.0
        %963 = vmatprep.subr.mxu0 0.0
        %964 = vmatpush1.msra.mxu0 0.0
        %965 = vmatprep.subr.mxu0 0.0
        %966 = vmatpush1.msra.mxu0 0.0
        %967 = vmatprep.subr.mxu0 0.0
        %968 = vmatpush1.msra.mxu0 0.0
        %969 = vmatprep.subr.mxu0 0.0
        %970 = vmatpush1.msra.mxu0 0.0
        %971 = vmatprep.subr.mxu0 0.0
        %972 = vmatpush1.msra.mxu0 0.0
        %973 = vmatprep.subr.mxu0 0.0
        %974 = vmatpush1.msra.mxu0 0.0
        %975 = vmatprep.subr.mxu0 0.0
        %976 = vmatpush1.msra.mxu0 0.0
        %977 = vmatprep.subr.mxu0 0.0
        %978 = vmatpush1.msra.mxu0 0.0
        %979 = vmatprep.subr.mxu0 0.0
        %980 = vmatpush1.msra.mxu0 0.0
        %981 = vmatprep.subr.mxu0 0.0
        %982 = vmatpush1.msra.mxu0 0.0
        %983 = vmatprep.subr.mxu0 0.0
        %984 = vmatpush1.msra.mxu0 0.0
        %985 = vmatprep.subr.mxu0 0.0
        %986 = vmatpush1.msra.mxu0 0.0
        %987 = vmatprep.subr.mxu0 0.0
        %988 = vmatpush1.msra.mxu0 0.0
        %989 = vmatprep.subr.mxu0 0.0
        %990 = vmatpush1.msra.mxu0 0.0
        %991 = vmatprep.subr.mxu0 0.0
        %992 = vmatpush1.msra.mxu0 0.0
        %993 = vmatprep.mubr.f32.mxu0 0.0
        %994 = vmatmul.mubr.f32.gmra.mrb[0].mxu0 %v918
        %v995 = vpop.f32.mrb[0].mxu0
        %v996 = vadd.f32 %v900, %v995
        %v997 = vpop.f32.mrb[0].mxu0
        %998 = vmatprep.mubr.f32.mxu0 0.0
        %999 = vmatmul.mubr.f32.gmra.mrb[0].mxu0 %v921
        %v1000 = vpop.f32.mrb[0].mxu0
        %v1001 = vadd.f32 %v905, %v1000
        %v1002 = vpop.f32.mrb[0].mxu0
        %1003 = vmatprep.mubr.f32.mxu0 0.0
        %1004 = vmatmul.mubr.f32.gmra.mrb[0].mxu0 %v924
        %v1005 = vpop.f32.mrb[0].mxu0
        %v1006 = vadd.f32 %v910, %v1005
        %v1007 = vpop.f32.mrb[0].mxu0
        %1008 = vmatprep.mubr.f32.mxu0 0.0
        %1009 = vmatmul.mubr.f32.gmra.mrb[0].mxu0 %v927
        %v1010 = vpop.f32.mrb[0].mxu0
        %v1011 = vadd.f32 %v915, %v1010
        %v1012 = vpop.f32.mrb[0].mxu0
        %1013 = vdwg.mxu0
        %1014 = vst.msk [vmem:[%s356] sm:$0xff] %vm580, %v996
        %1015 = vst.msk [vmem:[%s356 + $0x8] sm:$0xff] %vm580, %v1001
        %1016 = vst.msk [vmem:[%s356 + $0x10] sm:$0xff] %vm580, %v1006
        %1017 = vst.msk [vmem:[%s356 + $0x18] sm:$0xff] %vm580, %v1011
        %v1018 = vsel %vm580, %v996, 0.0
        %1019 = vadd.xlane.f32.xlu0 %v1018
        %v1020 = vpop.xlane.xlu0 %1019
        %v1021 = vsel %vm580, %v1001, 0.0
        %1022 = vadd.xlane.f32.xlu0 %v1021
        %v1023 = vpop.xlane.xlu0 %1022
        %v1024 = vsel %vm580, %v1006, 0.0
        %1025 = vadd.xlane.f32.xlu0 %v1024
        %v1026 = vpop.xlane.xlu0 %1025
        %v1027 = vsel %vm580, %v1011, 0.0
        %1028 = vadd.xlane.f32.xlu0 %v1027
        %v1029 = vpop.xlane.xlu0 %1028
        %vm1030 = vcmask 7168
        %1031 = vst.msk [vmem:[%s361] sm:$0xff] %vm1030, %v1020
        %1032 = vst.msk [vmem:[%s361 + $0x8] sm:$0xff] %vm1030, %v1023
        %1033 = vst.msk [vmem:[%s361 + $0x10] sm:$0xff] %vm1030, %v1026
        %1034 = vst.msk [vmem:[%s361 + $0x18] sm:$0xff] %vm1030, %v1029
        %v1035 = vmul.f32 %v996, %v996
        %v1036 = vmul.f32 %v1001, %v1001
        %v1037 = vmul.f32 %v1006, %v1006
        %v1038 = vmul.f32 %v1011, %v1011
        %v1039 = vsel %vm580, %v1035, 0.0
        %1040 = vadd.xlane.f32.xlu0 %v1039
        %v1041 = vpop.xlane.xlu0 %1040
        %v1042 = vsel %vm580, %v1036, 0.0
        %1043 = vadd.xlane.f32.xlu0 %v1042
        %v1044 = vpop.xlane.xlu0 %1043
        %v1045 = vsel %vm580, %v1037, 0.0
        %1046 = vadd.xlane.f32.xlu0 %v1045
        %v1047 = vpop.xlane.xlu0 %1046
        %v1048 = vsel %vm580, %v1038, 0.0
        %1049 = vadd.xlane.f32.xlu0 %v1048
        %v1050 = vpop.xlane.xlu0 %1049
        %vm1051 = vcmask 15368
        %1052 = vst.msk [vmem:[%s361] sm:$0xff] %vm1051, %v1041
        %1053 = vst.msk [vmem:[%s361 + $0x8] sm:$0xff] %vm1051, %v1044
        %1054 = vst.msk [vmem:[%s361 + $0x10] sm:$0xff] %vm1051, %v1047
        %1055 = vst.msk [vmem:[%s361 + $0x18] sm:$0xff] %vm1051, %v1050
      $region56: #{sa_layer.2} parent=47 // pred_fallthru
        _
      %p1056 = scmp.lt.s32.totalorder %s24, 1
      %s1057 = scalar_select %p1056, %s24, 1
      %s1058 = smul.addr %s1057, 4
      %s1059 = smul.addr %s1058, 8
      %s1060 = scalar_lea.vmem %s7, %s1059
      %p1061 = scmp.lt.s32.totalorder %s24, 1
      %s1062 = scalar_select %p1061, %s24, 1
      %s1063 = smul.addr %s1062, 4
      %s1064 = smul.addr %s1063, 8
      %s1065 = scalar_lea.vmem %s8, %s1064
      // Predicated region
      $region57: #{sa_layer.2} parent=47 // pred_check
        %p1066 = pneg %p209
      $region58: #{sa_layer.2} parent=47 // pred_check_branch
        %1068 = sbr.rel (%p1066) target = $region60
      $region59: #{sa_layer.2} parent=47 // pred_region
        _
      $region60: #{sa_layer.2} parent=47 // pred_fallthru
        _
      // Predicated region
      $region61: #{sa_layer.2} parent=47 // pred_check
        %p1069 = pneg %p235
      $region62: #{sa_layer.2} parent=47 // pred_check_branch
        %1071 = sbr.rel (%p1069) target = $region64
      $region63: #{sa_layer.2} parent=47 // pred_region
        _
      $region64: #{sa_layer.2} parent=47 // pred_fallthru
        _
    $region48: #{sa_layer.2} parent=5 // pred_fallthru
      _
    %p1072 = scmp.le.s32.totalorder 2, %s15
    // Predicated region
    $region65: #{sa_layer.2} parent=5 // pred_check
      %p1073 = pneg %p1072
    $region66: #{sa_layer.2} parent=5 // pred_check_branch
      %1075 = sbr.rel (%p1073) target = $region68
    $region67: #{sa_layer.2} parent=5 // pred_region
      %s1076 = ssub.s32 %s15, 2
      // Predicated region
      $region69: #{sa_layer.2} parent=67 // pred_check
        %p1077 = pneg %p215
      $region70: #{sa_layer.2} parent=67 // pred_check_branch
        %1079 = sbr.rel (%p1077) target = $region72
      $region71: #{sa_layer.2} parent=67 // pred_region
        %p1080 = scmp.lt.s32.totalorder %s26, 1
        %s1081 = scalar_select %p1080, %s26, 1
        %s1082 = smul.addr %s1081, 4
        %s1083 = smul.addr %s1082, 8
        %s1084 = scalar_lea.vmem %s7, %s1083
      $region72: #{sa_layer.2} parent=67 // pred_fallthru
        _
      // Predicated region
      $region73: #{sa_layer.2} parent=67 // pred_check
        %p1085 = pneg %p241
      $region74: #{sa_layer.2} parent=67 // pred_check_branch
        %1087 = sbr.rel (%p1085) target = $region76
      $region75: #{sa_layer.2} parent=67 // pred_region
        %p1088 = scmp.lt.s32.totalorder %s26, 1
        %s1089 = scalar_select %p1088, %s26, 1
        %s1090 = smul.addr %s1089, 4
        %s1091 = smul.addr %s1090, 8
        %s1092 = scalar_lea.vmem %s8, %s1091
      $region76: #{sa_layer.2} parent=67 // pred_fallthru
        _
    $region68: #{sa_layer.2} parent=5 // pred_fallthru
      _
  $region6: #{sa_layer.2} parent=0 // loop_footer
    %s19 = sadd.s32 1, %s15
  $region7: #{sa_layer.2} parent=0 // loop_footer_branch
    %14 = sbr.rel target = $region3
  $region8: #{sa_layer.2} parent=0 // loop_exit
    _

</llo_original>
